<compile_context>
chip_gen: v5e
topology: v5e:2x2
jax: 0.10.0
libtpu: 0.0.40
codegen_flags: <defaults>
</compile_context>

<pallas_src>
import functools

import jax
import jax.numpy as jnp
from jax.experimental import pallas as pl
from jax.experimental.pallas import tpu as pltpu

NUM_CLASSES = 9
SMOOTH = 1e-5


def _round_up(x, m):
    return ((x + m - 1) // m) * m


# --------------------------------------------------------------------------
# Kernel A: pointwise (1x1) conv, inference path (masks is None).
#   x block      : (1, Cin, TR, 128)
#   w (SMEM)     : (C, Cin), bias (SMEM): (C,)
#   logits block : (1, C, TR, 128)
# --------------------------------------------------------------------------
def _conv_kernel(x_ref, w_ref, b_ref, out_ref, *,
                 n_in, n_cls, tile_rows, chunk_rows):
    def do_chunk(r0, rows):
        xs = [x_ref[0, k, pl.ds(r0, rows), :].astype(jnp.float32)
              for k in range(n_in)]
        for c in range(n_cls):
            acc = xs[0] * w_ref[c, 0]
            for k in range(1, n_in):
                acc = acc + xs[k] * w_ref[c, k]
            acc = acc + b_ref[c]
            out_ref[0, c, pl.ds(r0, rows), :] = acc.astype(out_ref.dtype)

    n_full = tile_rows // chunk_rows
    rem = tile_rows - n_full * chunk_rows
    if n_full > 0:
        @pl.loop(0, n_full)
        def _(chunk):
            do_chunk(pl.multiple_of(chunk * chunk_rows, chunk_rows), chunk_rows)
    if rem > 0:
        do_chunk(n_full * chunk_rows, rem)


# --------------------------------------------------------------------------
# Kernel B: fused conv + Dice/CE statistics (training path).
#   Per batch b it accumulates over pixel tiles (program_id(1)):
#     inter[c] = sum_px softmax(logits)[c] * onehot[c]
#     zsum[c]  = sum_px softmax(logits)[c]^2        (DiceLossed z_sum)
#     ysum[c]  = sum_px onehot[c]                    (DiceLossed y_sum)
#     ce       = sum_px (logsumexp(logits) - logits[label])
# --------------------------------------------------------------------------
def _fused_kernel(x_ref, w_ref, b_ref, lab_ref,
                  out_ref, inter_ref, zsum_ref, ysum_ref, ce_ref,
                  acc_i, acc_z, acc_y, acc_c, *,
                  n_in, n_cls, tile_rows, chunk_rows, hw, padded):
    i = pl.program_id(1)
    n_tiles = pl.num_programs(1)

    @pl.when(i == 0)
    def _():
        acc_i[...] = jnp.zeros_like(acc_i)
        acc_z[...] = jnp.zeros_like(acc_z)
        acc_y[...] = jnp.zeros_like(acc_y)
        acc_c[...] = jnp.zeros_like(acc_c)

    def process(r0, rows, masked):
        # ---- 1x1 conv: unrolled VPU broadcast-FMA (per-class (rows,128)) ----
        xs = [x_ref[0, k, pl.ds(r0, rows), :].astype(jnp.float32)
              for k in range(n_in)]
        logits = []
        for c in range(n_cls):
            acc = xs[0] * w_ref[c, 0]
            for k in range(1, n_in):
                acc = acc + xs[k] * w_ref[c, k]
            acc = acc + b_ref[c]
            logits.append(acc)
            out_ref[0, c, pl.ds(r0, rows), :] = acc.astype(out_ref.dtype)

        labels = lab_ref[0, pl.ds(r0, rows), :]

        if masked:  # only traced on the last tile, only when padding exists
            row = jax.lax.broadcasted_iota(jnp.int32, (rows, 128), 0)
            lane = jax.lax.broadcasted_iota(jnp.int32, (rows, 128), 1)
            pix = (i * tile_rows + r0 + row) * 128 + lane
            valid = pix < hw
            valid_f = valid.astype(jnp.float32)
            labels = jnp.where(valid, labels, -1)   # padding -> no class

        # ---- softmax over the class axis (elementwise on per-class slabs) ----
        m = logits[0]
        for c in range(1, n_cls):
            m = jnp.maximum(m, logits[c])
        es = [jnp.exp(logits[c] - m) for c in range(n_cls)]
        s = es[0]
        for c in range(1, n_cls):
            s = s + es[c]
        inv_s = 1.0 / s                      # exact divide (fidelity to torch)
        logz = m + jnp.log(s)

        lal = jnp.zeros_like(m)              # logit gathered at the target
        for c in range(n_cls):
            p_c = es[c] * inv_s
            oh = (labels == c).astype(jnp.float32)   # 0 on padded pixels
            pp = p_c * p_c
            if masked:
                pp = pp * valid_f
            acc_i[pl.ds(c, 1), :] += jnp.sum(p_c * oh, axis=0, keepdims=True)
            acc_z[pl.ds(c, 1), :] += jnp.sum(pp, axis=0, keepdims=True)
            acc_y[pl.ds(c, 1), :] += jnp.sum(oh, axis=0, keepdims=True)
            lal = lal + logits[c] * oh

        ce = logz - lal
        if masked:
            ce = ce * valid_f
        acc_c[pl.ds(0, 1), :] += jnp.sum(ce, axis=0, keepdims=True)

    n_full = tile_rows // chunk_rows
    rem = tile_rows - n_full * chunk_rows

    def run(masked):
        if n_full > 0:
            @pl.loop(0, n_full)
            def _(chunk):
                process(pl.multiple_of(chunk * chunk_rows, chunk_rows),
                        chunk_rows, masked)
        if rem > 0:
            process(n_full * chunk_rows, rem, masked)

    if padded:
        last = n_tiles - 1

        @pl.when(i < last)
        def _():
            run(False)       # unmasked fast path

        @pl.when(i == last)
        def _():
            run(True)        # masked tail tile
    else:
        run(False)

    @pl.when(i == n_tiles - 1)
    def _():
        inter_ref[0] = jnp.sum(acc_i[...], axis=1, keepdims=True)
        zsum_ref[0] = jnp.sum(acc_z[...], axis=1, keepdims=True)
        ysum_ref[0] = jnp.sum(acc_y[...], axis=1, keepdims=True)
        ce_ref[0] = jnp.sum(acc_c[...], axis=1, keepdims=True)


# --------------------------------------------------------------------------
# Wrappers
# --------------------------------------------------------------------------
def _layout(images, max_rows):
    """NCHW -> (B, Cin, rows, 128) pixel slab (pad only when unavoidable)."""
    B, Cin, H, W = images.shape
    HW = H * W
    rows = -(-HW // 128)
    if rows <= max_rows:
        tile_rows = rows            # full-dim block: no divisibility issue
        rows_padded = rows
    else:
        tile_rows = max_rows        # multiple of 8
        rows_padded = _round_up(rows, max_rows)
    pad_px = rows_padded * 128 - HW
    x = images.reshape(B, Cin, HW)
    if pad_px:
        x = jnp.pad(x, ((0, 0), (0, 0), (0, pad_px)))
    x = x.reshape(B, Cin, rows_padded, 128)
    return x, HW, rows_padded, tile_rows, pad_px


def fhfu_forward(params, images, masks=None, *, tile_pixels=32768,
                 logits_dtype=jnp.float32):
    """images: [B, Cin, H, W] NCHW; masks: [B, 1, H, W] int (optional)."""
    B, Cin, H, W = images.shape
    w = params["w"]                    # (C, Cin)
    b = params["b"]                    # (C,)
    C = w.shape[0]

    max_rows = max(8, ((tile_pixels // 128) // 8) * 8)
    x, HW, rows_padded, TR, pad_px = _layout(images, max_rows)
    n_tiles = rows_padded // TR
    grid = (B, n_tiles)
    chunk_rows = min(8, TR)            # 1024-px chunks keep vreg pressure low

    x_spec = pl.BlockSpec((1, Cin, TR, 128), lambda bi, ti: (bi, 0, ti, 0))
    w_spec = pl.BlockSpec(memory_space=pltpu.MemorySpace.SMEM)
    b_spec = pl.BlockSpec(memory_space=pltpu.MemorySpace.SMEM)
    o_spec = pl.BlockSpec((1, C, TR, 128), lambda bi, ti: (bi, 0, ti, 0))

    logit_bytes = jnp.dtype(logits_dtype).itemsize
    x_bytes = x.dtype.itemsize
    n_px = B * rows_padded * 128

    if masks is None:
        kernel = functools.partial(_conv_kernel, n_in=Cin, n_cls=C,
                                   tile_rows=TR, chunk_rows=chunk_rows)
        cost = pl.CostEstimate(
            flops=2 * C * Cin * n_px,
            transcendentals=0,
            bytes_accessed=(Cin * x_bytes + C * logit_bytes) * n_px)
        logits4 = pl.pallas_call(
            kernel,
            out_shape=jax.ShapeDtypeStruct((B, C, rows_padded, 128),
                                           logits_dtype),
            grid_spec=pltpu.PrefetchScalarGridSpec(
                num_scalar_prefetch=0,
                grid=grid,
                in_specs=[x_spec, w_spec, b_spec],
                out_specs=o_spec),
            compiler_params=pltpu.CompilerParams(
                dimension_semantics=("parallel", "parallel")),
            cost_estimate=cost,
        )(x, w, b)
        logits = logits4.reshape(B, C, rows_padded * 128)
        if pad_px:
            logits = logits[:, :, :HW]
        return logits.reshape(B, C, H, W)

    labels = masks.reshape(B, HW).astype(jnp.int32)   # masks.squeeze(1).long()
    if pad_px:
        labels = jnp.pad(labels, ((0, 0), (0, pad_px)))
    labels = labels.reshape(B, rows_padded, 128)

    lab_spec = pl.BlockSpec((1, TR, 128), lambda bi, ti: (bi, ti, 0))
    stat_spec = pl.BlockSpec((1, C, 1), lambda bi, ti: (bi, 0, 0))
    ce_spec = pl.BlockSpec((1, 1, 1), lambda bi, ti: (bi, 0, 0))

    kernel = functools.partial(_fused_kernel, n_in=Cin, n_cls=C, tile_rows=TR,
                               chunk_rows=chunk_rows, hw=HW,
                               padded=bool(pad_px))
    cost = pl.CostEstimate(
        flops=(2 * C * Cin + 12 * C) * n_px,
        transcendentals=(C + 3) * n_px,
        bytes_accessed=(Cin * x_bytes + C * logit_bytes + 4) * n_px)

    logits4, inter_b, zsum_b, ysum_b, ce_b = pl.pallas_call(
        kernel,
        out_shape=(
            jax.ShapeDtypeStruct((B, C, rows_padded, 128), logits_dtype),
            jax.ShapeDtypeStruct((B, C, 1), jnp.float32),
            jax.ShapeDtypeStruct((B, C, 1), jnp.float32),
            jax.ShapeDtypeStruct((B, C, 1), jnp.float32),
            jax.ShapeDtypeStruct((B, 1, 1), jnp.float32),
        ),
        grid_spec=pltpu.PrefetchScalarGridSpec(
            num_scalar_prefetch=0,
            grid=grid,
            in_specs=[x_spec, w_spec, b_spec, lab_spec],
            out_specs=[o_spec, stat_spec, stat_spec, stat_spec, ce_spec],
            scratch_shapes=[
                pltpu.VMEM((C, 128), jnp.float32),   # inter lane-partials
                pltpu.VMEM((C, 128), jnp.float32),   # zsum  lane-partials
                pltpu.VMEM((C, 128), jnp.float32),   # ysum  lane-partials
                pltpu.VMEM((1, 128), jnp.float32),   # ce    lane-partials
            ]),
        compiler_params=pltpu.CompilerParams(
            dimension_semantics=("parallel", "arbitrary")),
        cost_estimate=cost,
    )(x, w, b, labels)

    logits = logits4.reshape(B, C, rows_padded * 128)
    if pad_px:
        logits = logits[:, :, :HW]
    logits = logits.reshape(B, C, H, W)

    # Tiny per-batch partials -> global sums in the wrapper.
    inter = jnp.sum(inter_b, axis=(0, 2))                  # (C,)
    zsum = jnp.sum(zsum_b, axis=(0, 2))
    ysum = jnp.sum(ysum_b, axis=(0, 2))
    ce_sum = jnp.sum(ce_b)

    # DiceLossed: per-class dice, uniform weights, averaged over classes.
    dice_per_class = 1.0 - (2.0 * inter + SMOOTH) / (zsum + ysum + SMOOTH)
    loss1 = jnp.sum(dice_per_class) / C
    # nn.CrossEntropyLoss default: mean over all (batch x spatial) pixels.
    loss2 = ce_sum / (B * HW)
    return logits, loss1 + loss2


def init_params(key, in_channels, num_classes=NUM_CLASSES):
    kw, kb = jax.random.split(key)
    w = 0.1 * jax.random.normal(kw, (num_classes, in_channels), jnp.float32)
    b = 0.01 * jax.random.normal(kb, (num_classes,), jnp.float32)
    return {"w": w, "b": b}


# Pure-JAX reference of the same math (for a loose numerical check).
def _reference(params, images, masks):
    w, b = params["w"], params["b"]
    B, Cin, H, W = images.shape
    C = w.shape[0]
    HW = H * W
    xf = images.reshape(B, Cin, HW).astype(jnp.float32)
    logits = jnp.einsum("ck,bkp->bcp", w, xf) + b[None, :, None]
    labels = masks.reshape(B, HW).astype(jnp.int32)
    p = jax.nn.softmax(logits, axis=1)
    onehot = jax.nn.one_hot(labels, C, axis=1, dtype=jnp.float32)
    inter = jnp.sum(p * onehot, axis=(0, 2))
    zsum = jnp.sum(p * p, axis=(0, 2))
    ysum = jnp.sum(onehot, axis=(0, 2))
    dice = 1.0 - (2.0 * inter + SMOOTH) / (zsum + ysum + SMOOTH)
    loss1 = jnp.sum(dice) / C
    logz = jax.scipy.special.logsumexp(logits, axis=1)
    lal = jnp.take_along_axis(logits, labels[:, None, :], axis=1)[:, 0, :]
    loss2 = jnp.mean(logz - lal)
    return logits.reshape(B, C, H, W), loss1 + loss2


if __name__ == "__main__":
    key = jax.random.PRNGKey(0)
    k_img, k_msk, k_par = jax.random.split(key, 3)

    B, Cin, H, W = 2, 4, 16, 16
    images = jax.random.normal(k_img, (B, Cin, H, W), jnp.float32)
    masks = jax.random.randint(k_msk, (B, 1, H, W), 0, NUM_CLASSES, jnp.int32)

    params = init_params(k_par, Cin)

    # Training path (logits + fused Dice/CE loss).
    logits, loss = fhfu_forward(params, images, masks)
    jax.block_until_ready((logits, loss))
    assert logits.shape == (B, NUM_CLASSES, H, W)
    assert loss.shape == ()
    assert bool(jnp.isfinite(loss))

    # Inference path (logits only).
    logits_only = fhfu_forward(params, images)
    jax.block_until_ready(logits_only)
    assert logits_only.shape == (B, NUM_CLASSES, H, W)

    # Loose numerical check against a pure-JAX reference of the same math.
    ref_logits, ref_loss = _reference(params, images, masks)
    assert bool(jnp.allclose(logits, ref_logits, rtol=1e-4, atol=1e-4))
    assert bool(jnp.allclose(logits_only, ref_logits, rtol=1e-4, atol=1e-4))
    assert bool(jnp.allclose(loss, ref_loss, rtol=1e-3, atol=1e-3))

    print("KERNEL_OK")
</pallas_src>

<mosaic_0001>
module attributes {stable_mosaic.version = 11 : i64} {
  func.func @_fused_kernel(%arg0: i32, %arg1: i32, %arg2: memref<1x4x2x128xf32, #tpu.memory_space<vmem>>, %arg3: memref<9x4xf32, #tpu.memory_space<smem>>, %arg4: memref<9xf32, #tpu.memory_space<smem>>, %arg5: memref<1x2x128xi32, #tpu.memory_space<vmem>>, %arg6: memref<1x9x2x128xf32, #tpu.memory_space<vmem>>, %arg7: memref<1x9x1xf32, #tpu.memory_space<vmem>>, %arg8: memref<1x9x1xf32, #tpu.memory_space<vmem>>, %arg9: memref<1x9x1xf32, #tpu.memory_space<vmem>>, %arg10: memref<1x1x1xf32, #tpu.memory_space<vmem>>, %arg11: memref<9x128xf32, #tpu.memory_space<vmem>>, %arg12: memref<9x128xf32, #tpu.memory_space<vmem>>, %arg13: memref<9x128xf32, #tpu.memory_space<vmem>>, %arg14: memref<1x128xf32, #tpu.memory_space<vmem>>) attributes {dimension_semantics = [#tpu.dimension_semantics<parallel>, #tpu.dimension_semantics<arbitrary>], iteration_bounds = array<i64: 2, 1>, scalar_prefetch = 0 : i64, scratch_operands = 4 : i64, tpu.core_type = #tpu.core_type<tc>, window_params = [{transform_indices = @transform_0, window_bounds = array<i64: 1, 4, 2, 128>}, {transform_indices = @transform_1, window_bounds = array<i64: 9, 4>}, {transform_indices = @transform_2, window_bounds = array<i64: 9>}, {transform_indices = @transform_3, window_bounds = array<i64: 1, 2, 128>}, {transform_indices = @transform_4, window_bounds = array<i64: 1, 9, 2, 128>}, {transform_indices = @transform_5, window_bounds = array<i64: 1, 9, 1>}, {transform_indices = @transform_6, window_bounds = array<i64: 1, 9, 1>}, {transform_indices = @transform_7, window_bounds = array<i64: 1, 9, 1>}, {transform_indices = @transform_8, window_bounds = array<i64: 1, 1, 1>}]} {
    %c0_i32 = arith.constant 0 : i32
    %0 = arith.cmpi eq, %arg1, %c0_i32 : i32
    %1 = arith.extui %0 : i1 to i32
    %c0_i32_0 = arith.constant 0 : i32
    %2 = arith.cmpi ne, %1, %c0_i32_0 : i32
    scf.if %2 {
      %cst_263 = arith.constant 0.000000e+00 : f32
      %484 = vector.broadcast %cst_263 : f32 to vector<9x128xf32>
      %c0_264 = arith.constant 0 : index
      %c0_265 = arith.constant 0 : index
      %485 = vector.load %arg11[%c0_264, %c0_265] : memref<9x128xf32, #tpu.memory_space<vmem>>, vector<9x128xf32>
      tpu.vector_store %arg11[%c0_264, %c0_265], %484 {strides = array<i32>} : memref<9x128xf32, #tpu.memory_space<vmem>>, vector<9x128xf32>,
      %cst_266 = arith.constant 0.000000e+00 : f32
      %486 = vector.broadcast %cst_266 : f32 to vector<9x128xf32>
      %c0_267 = arith.constant 0 : index
      %c0_268 = arith.constant 0 : index
      %487 = vector.load %arg12[%c0_267, %c0_268] : memref<9x128xf32, #tpu.memory_space<vmem>>, vector<9x128xf32>
      tpu.vector_store %arg12[%c0_267, %c0_268], %486 {strides = array<i32>} : memref<9x128xf32, #tpu.memory_space<vmem>>, vector<9x128xf32>,
      %cst_269 = arith.constant 0.000000e+00 : f32
      %488 = vector.broadcast %cst_269 : f32 to vector<9x128xf32>
      %c0_270 = arith.constant 0 : index
      %c0_271 = arith.constant 0 : index
      %489 = vector.load %arg13[%c0_270, %c0_271] : memref<9x128xf32, #tpu.memory_space<vmem>>, vector<9x128xf32>
      tpu.vector_store %arg13[%c0_270, %c0_271], %488 {strides = array<i32>} : memref<9x128xf32, #tpu.memory_space<vmem>>, vector<9x128xf32>,
      %cst_272 = arith.constant 0.000000e+00 : f32
      %490 = vector.broadcast %cst_272 : f32 to vector<1x128xf32>
      %c0_273 = arith.constant 0 : index
      %c0_274 = arith.constant 0 : index
      %491 = vector.load %arg14[%c0_273, %c0_274] : memref<1x128xf32, #tpu.memory_space<vmem>>, vector<1x128xf32>
      tpu.vector_store %arg14[%c0_273, %c0_274], %490 {strides = array<i32>} : memref<1x128xf32, #tpu.memory_space<vmem>>, vector<1x128xf32>,
    } else {
    }
    %c0_i32_1 = arith.constant 0 : i32
    %c1_i32 = arith.constant 1 : i32
    %3 = arith.muli %c0_i32_1, %c1_i32 : i32
    %c0_i32_2 = arith.constant 0 : i32
    %4 = arith.addi %c0_i32_2, %3 : i32
    %c2_i32 = arith.constant 2 : i32
    %5 = arith.muli %4, %c2_i32 : i32
    %6 = tpu.assume_multiple %5, 2 : i32
    %c0 = arith.constant 0 : index
    %c0_3 = arith.constant 0 : index
    %7 = arith.index_cast %6 : i32 to index
    %c0_4 = arith.constant 0 : index
    %8 = vector.load %arg2[%c0, %c0_3, %7, %c0_4] : memref<1x4x2x128xf32, #tpu.memory_space<vmem>>, vector<1x1x2x128xf32>
    %9 = vector.shape_cast %8 : vector<1x1x2x128xf32> to vector<2x128xf32>
    %c0_5 = arith.constant 0 : index
    %c1 = arith.constant 1 : index
    %10 = arith.index_cast %6 : i32 to index
    %c0_6 = arith.constant 0 : index
    %11 = vector.load %arg2[%c0_5, %c1, %10, %c0_6] : memref<1x4x2x128xf32, #tpu.memory_space<vmem>>, vector<1x1x2x128xf32>
    %12 = vector.shape_cast %11 : vector<1x1x2x128xf32> to vector<2x128xf32>
    %c0_7 = arith.constant 0 : index
    %c2 = arith.constant 2 : index
    %13 = arith.index_cast %6 : i32 to index
    %c0_8 = arith.constant 0 : index
    %14 = vector.load %arg2[%c0_7, %c2, %13, %c0_8] : memref<1x4x2x128xf32, #tpu.memory_space<vmem>>, vector<1x1x2x128xf32>
    %15 = vector.shape_cast %14 : vector<1x1x2x128xf32> to vector<2x128xf32>
    %c0_9 = arith.constant 0 : index
    %c3 = arith.constant 3 : index
    %16 = arith.index_cast %6 : i32 to index
    %c0_10 = arith.constant 0 : index
    %17 = vector.load %arg2[%c0_9, %c3, %16, %c0_10] : memref<1x4x2x128xf32, #tpu.memory_space<vmem>>, vector<1x1x2x128xf32>
    %18 = vector.shape_cast %17 : vector<1x1x2x128xf32> to vector<2x128xf32>
    %c0_11 = arith.constant 0 : index
    %c0_12 = arith.constant 0 : index
    %19 = memref.load %arg3[%c0_11, %c0_12] : memref<9x4xf32, #tpu.memory_space<smem>>
    %20 = vector.broadcast %19 : f32 to vector<2x128xf32>
    %21 = arith.mulf %9, %20 : vector<2x128xf32>
    %c0_13 = arith.constant 0 : index
    %c1_14 = arith.constant 1 : index
    %22 = memref.load %arg3[%c0_13, %c1_14] : memref<9x4xf32, #tpu.memory_space<smem>>
    %23 = vector.broadcast %22 : f32 to vector<2x128xf32>
    %24 = arith.mulf %12, %23 : vector<2x128xf32>
    %25 = arith.addf %21, %24 : vector<2x128xf32>
    %c0_15 = arith.constant 0 : index
    %c2_16 = arith.constant 2 : index
    %26 = memref.load %arg3[%c0_15, %c2_16] : memref<9x4xf32, #tpu.memory_space<smem>>
    %27 = vector.broadcast %26 : f32 to vector<2x128xf32>
    %28 = arith.mulf %15, %27 : vector<2x128xf32>
    %29 = arith.addf %25, %28 : vector<2x128xf32>
    %c0_17 = arith.constant 0 : index
    %c3_18 = arith.constant 3 : index
    %30 = memref.load %arg3[%c0_17, %c3_18] : memref<9x4xf32, #tpu.memory_space<smem>>
    %31 = vector.broadcast %30 : f32 to vector<2x128xf32>
    %32 = arith.mulf %18, %31 : vector<2x128xf32>
    %33 = arith.addf %29, %32 : vector<2x128xf32>
    %c0_19 = arith.constant 0 : index
    %34 = memref.load %arg4[%c0_19] : memref<9xf32, #tpu.memory_space<smem>>
    %35 = vector.broadcast %34 : f32 to vector<2x128xf32>
    %36 = arith.addf %33, %35 : vector<2x128xf32>
    %c0_20 = arith.constant 0 : index
    %c0_21 = arith.constant 0 : index
    %37 = arith.index_cast %6 : i32 to index
    %c0_22 = arith.constant 0 : index
    %38 = vector.load %arg6[%c0_20, %c0_21, %37, %c0_22] : memref<1x9x2x128xf32, #tpu.memory_space<vmem>>, vector<1x1x2x128xf32>
    %39 = vector.shape_cast %38 : vector<1x1x2x128xf32> to vector<2x128xf32>
    %40 = vector.shape_cast %36 : vector<2x128xf32> to vector<1x1x2x128xf32>
    tpu.vector_store %arg6[%c0_20, %c0_21, %37, %c0_22], %40 {strides = array<i32>} : memref<1x9x2x128xf32, #tpu.memory_space<vmem>>, vector<1x1x2x128xf32>,
    %c1_23 = arith.constant 1 : index
    %c0_24 = arith.constant 0 : index
    %41 = memref.load %arg3[%c1_23, %c0_24] : memref<9x4xf32, #tpu.memory_space<smem>>
    %42 = vector.broadcast %41 : f32 to vector<2x128xf32>
    %43 = arith.mulf %9, %42 : vector<2x128xf32>
    %c1_25 = arith.constant 1 : index
    %c1_26 = arith.constant 1 : index
    %44 = memref.load %arg3[%c1_25, %c1_26] : memref<9x4xf32, #tpu.memory_space<smem>>
    %45 = vector.broadcast %44 : f32 to vector<2x128xf32>
    %46 = arith.mulf %12, %45 : vector<2x128xf32>
    %47 = arith.addf %43, %46 : vector<2x128xf32>
    %c1_27 = arith.constant 1 : index
    %c2_28 = arith.constant 2 : index
    %48 = memref.load %arg3[%c1_27, %c2_28] : memref<9x4xf32, #tpu.memory_space<smem>>
    %49 = vector.broadcast %48 : f32 to vector<2x128xf32>
    %50 = arith.mulf %15, %49 : vector<2x128xf32>
    %51 = arith.addf %47, %50 : vector<2x128xf32>
    %c1_29 = arith.constant 1 : index
    %c3_30 = arith.constant 3 : index
    %52 = memref.load %arg3[%c1_29, %c3_30] : memref<9x4xf32, #tpu.memory_space<smem>>
    %53 = vector.broadcast %52 : f32 to vector<2x128xf32>
    %54 = arith.mulf %18, %53 : vector<2x128xf32>
    %55 = arith.addf %51, %54 : vector<2x128xf32>
    %c1_31 = arith.constant 1 : index
    %56 = memref.load %arg4[%c1_31] : memref<9xf32, #tpu.memory_space<smem>>
    %57 = vector.broadcast %56 : f32 to vector<2x128xf32>
    %58 = arith.addf %55, %57 : vector<2x128xf32>
    %c0_32 = arith.constant 0 : index
    %c1_33 = arith.constant 1 : index
    %59 = arith.index_cast %6 : i32 to index
    %c0_34 = arith.constant 0 : index
    %60 = vector.load %arg6[%c0_32, %c1_33, %59, %c0_34] : memref<1x9x2x128xf32, #tpu.memory_space<vmem>>, vector<1x1x2x128xf32>
    %61 = vector.shape_cast %60 : vector<1x1x2x128xf32> to vector<2x128xf32>
    %62 = vector.shape_cast %58 : vector<2x128xf32> to vector<1x1x2x128xf32>
    tpu.vector_store %arg6[%c0_32, %c1_33, %59, %c0_34], %62 {strides = array<i32>} : memref<1x9x2x128xf32, #tpu.memory_space<vmem>>, vector<1x1x2x128xf32>,
    %c2_35 = arith.constant 2 : index
    %c0_36 = arith.constant 0 : index
    %63 = memref.load %arg3[%c2_35, %c0_36] : memref<9x4xf32, #tpu.memory_space<smem>>
    %64 = vector.broadcast %63 : f32 to vector<2x128xf32>
    %65 = arith.mulf %9, %64 : vector<2x128xf32>
    %c2_37 = arith.constant 2 : index
    %c1_38 = arith.constant 1 : index
    %66 = memref.load %arg3[%c2_37, %c1_38] : memref<9x4xf32, #tpu.memory_space<smem>>
    %67 = vector.broadcast %66 : f32 to vector<2x128xf32>
    %68 = arith.mulf %12, %67 : vector<2x128xf32>
    %69 = arith.addf %65, %68 : vector<2x128xf32>
    %c2_39 = arith.constant 2 : index
    %c2_40 = arith.constant 2 : index
    %70 = memref.load %arg3[%c2_39, %c2_40] : memref<9x4xf32, #tpu.memory_space<smem>>
    %71 = vector.broadcast %70 : f32 to vector<2x128xf32>
    %72 = arith.mulf %15, %71 : vector<2x128xf32>
    %73 = arith.addf %69, %72 : vector<2x128xf32>
    %c2_41 = arith.constant 2 : index
    %c3_42 = arith.constant 3 : index
    %74 = memref.load %arg3[%c2_41, %c3_42] : memref<9x4xf32, #tpu.memory_space<smem>>
    %75 = vector.broadcast %74 : f32 to vector<2x128xf32>
    %76 = arith.mulf %18, %75 : vector<2x128xf32>
    %77 = arith.addf %73, %76 : vector<2x128xf32>
    %c2_43 = arith.constant 2 : index
    %78 = memref.load %arg4[%c2_43] : memref<9xf32, #tpu.memory_space<smem>>
    %79 = vector.broadcast %78 : f32 to vector<2x128xf32>
    %80 = arith.addf %77, %79 : vector<2x128xf32>
    %c0_44 = arith.constant 0 : index
    %c2_45 = arith.constant 2 : index
    %81 = arith.index_cast %6 : i32 to index
    %c0_46 = arith.constant 0 : index
    %82 = vector.load %arg6[%c0_44, %c2_45, %81, %c0_46] : memref<1x9x2x128xf32, #tpu.memory_space<vmem>>, vector<1x1x2x128xf32>
    %83 = vector.shape_cast %82 : vector<1x1x2x128xf32> to vector<2x128xf32>
    %84 = vector.shape_cast %80 : vector<2x128xf32> to vector<1x1x2x128xf32>
    tpu.vector_store %arg6[%c0_44, %c2_45, %81, %c0_46], %84 {strides = array<i32>} : memref<1x9x2x128xf32, #tpu.memory_space<vmem>>, vector<1x1x2x128xf32>,
    %c3_47 = arith.constant 3 : index
    %c0_48 = arith.constant 0 : index
    %85 = memref.load %arg3[%c3_47, %c0_48] : memref<9x4xf32, #tpu.memory_space<smem>>
    %86 = vector.broadcast %85 : f32 to vector<2x128xf32>
    %87 = arith.mulf %9, %86 : vector<2x128xf32>
    %c3_49 = arith.constant 3 : index
    %c1_50 = arith.constant 1 : index
    %88 = memref.load %arg3[%c3_49, %c1_50] : memref<9x4xf32, #tpu.memory_space<smem>>
    %89 = vector.broadcast %88 : f32 to vector<2x128xf32>
    %90 = arith.mulf %12, %89 : vector<2x128xf32>
    %91 = arith.addf %87, %90 : vector<2x128xf32>
    %c3_51 = arith.constant 3 : index
    %c2_52 = arith.constant 2 : index
    %92 = memref.load %arg3[%c3_51, %c2_52] : memref<9x4xf32, #tpu.memory_space<smem>>
    %93 = vector.broadcast %92 : f32 to vector<2x128xf32>
    %94 = arith.mulf %15, %93 : vector<2x128xf32>
    %95 = arith.addf %91, %94 : vector<2x128xf32>
    %c3_53 = arith.constant 3 : index
    %c3_54 = arith.constant 3 : index
    %96 = memref.load %arg3[%c3_53, %c3_54] : memref<9x4xf32, #tpu.memory_space<smem>>
    %97 = vector.broadcast %96 : f32 to vector<2x128xf32>
    %98 = arith.mulf %18, %97 : vector<2x128xf32>
    %99 = arith.addf %95, %98 : vector<2x128xf32>
    %c3_55 = arith.constant 3 : index
    %100 = memref.load %arg4[%c3_55] : memref<9xf32, #tpu.memory_space<smem>>
    %101 = vector.broadcast %100 : f32 to vector<2x128xf32>
    %102 = arith.addf %99, %101 : vector<2x128xf32>
    %c0_56 = arith.constant 0 : index
    %c3_57 = arith.constant 3 : index
    %103 = arith.index_cast %6 : i32 to index
    %c0_58 = arith.constant 0 : index
    %104 = vector.load %arg6[%c0_56, %c3_57, %103, %c0_58] : memref<1x9x2x128xf32, #tpu.memory_space<vmem>>, vector<1x1x2x128xf32>
    %105 = vector.shape_cast %104 : vector<1x1x2x128xf32> to vector<2x128xf32>
    %106 = vector.shape_cast %102 : vector<2x128xf32> to vector<1x1x2x128xf32>
    tpu.vector_store %arg6[%c0_56, %c3_57, %103, %c0_58], %106 {strides = array<i32>} : memref<1x9x2x128xf32, #tpu.memory_space<vmem>>, vector<1x1x2x128xf32>,
    %c4 = arith.constant 4 : index
    %c0_59 = arith.constant 0 : index
    %107 = memref.load %arg3[%c4, %c0_59] : memref<9x4xf32, #tpu.memory_space<smem>>
    %108 = vector.broadcast %107 : f32 to vector<2x128xf32>
    %109 = arith.mulf %9, %108 : vector<2x128xf32>
    %c4_60 = arith.constant 4 : index
    %c1_61 = arith.constant 1 : index
    %110 = memref.load %arg3[%c4_60, %c1_61] : memref<9x4xf32, #tpu.memory_space<smem>>
    %111 = vector.broadcast %110 : f32 to vector<2x128xf32>
    %112 = arith.mulf %12, %111 : vector<2x128xf32>
    %113 = arith.addf %109, %112 : vector<2x128xf32>
    %c4_62 = arith.constant 4 : index
    %c2_63 = arith.constant 2 : index
    %114 = memref.load %arg3[%c4_62, %c2_63] : memref<9x4xf32, #tpu.memory_space<smem>>
    %115 = vector.broadcast %114 : f32 to vector<2x128xf32>
    %116 = arith.mulf %15, %115 : vector<2x128xf32>
    %117 = arith.addf %113, %116 : vector<2x128xf32>
    %c4_64 = arith.constant 4 : index
    %c3_65 = arith.constant 3 : index
    %118 = memref.load %arg3[%c4_64, %c3_65] : memref<9x4xf32, #tpu.memory_space<smem>>
    %119 = vector.broadcast %118 : f32 to vector<2x128xf32>
    %120 = arith.mulf %18, %119 : vector<2x128xf32>
    %121 = arith.addf %117, %120 : vector<2x128xf32>
    %c4_66 = arith.constant 4 : index
    %122 = memref.load %arg4[%c4_66] : memref<9xf32, #tpu.memory_space<smem>>
    %123 = vector.broadcast %122 : f32 to vector<2x128xf32>
    %124 = arith.addf %121, %123 : vector<2x128xf32>
    %c0_67 = arith.constant 0 : index
    %c4_68 = arith.constant 4 : index
    %125 = arith.index_cast %6 : i32 to index
    %c0_69 = arith.constant 0 : index
    %126 = vector.load %arg6[%c0_67, %c4_68, %125, %c0_69] : memref<1x9x2x128xf32, #tpu.memory_space<vmem>>, vector<1x1x2x128xf32>
    %127 = vector.shape_cast %126 : vector<1x1x2x128xf32> to vector<2x128xf32>
    %128 = vector.shape_cast %124 : vector<2x128xf32> to vector<1x1x2x128xf32>
    tpu.vector_store %arg6[%c0_67, %c4_68, %125, %c0_69], %128 {strides = array<i32>} : memref<1x9x2x128xf32, #tpu.memory_space<vmem>>, vector<1x1x2x128xf32>,
    %c5 = arith.constant 5 : index
    %c0_70 = arith.constant 0 : index
    %129 = memref.load %arg3[%c5, %c0_70] : memref<9x4xf32, #tpu.memory_space<smem>>
    %130 = vector.broadcast %129 : f32 to vector<2x128xf32>
    %131 = arith.mulf %9, %130 : vector<2x128xf32>
    %c5_71 = arith.constant 5 : index
    %c1_72 = arith.constant 1 : index
    %132 = memref.load %arg3[%c5_71, %c1_72] : memref<9x4xf32, #tpu.memory_space<smem>>
    %133 = vector.broadcast %132 : f32 to vector<2x128xf32>
    %134 = arith.mulf %12, %133 : vector<2x128xf32>
    %135 = arith.addf %131, %134 : vector<2x128xf32>
    %c5_73 = arith.constant 5 : index
    %c2_74 = arith.constant 2 : index
    %136 = memref.load %arg3[%c5_73, %c2_74] : memref<9x4xf32, #tpu.memory_space<smem>>
    %137 = vector.broadcast %136 : f32 to vector<2x128xf32>
    %138 = arith.mulf %15, %137 : vector<2x128xf32>
    %139 = arith.addf %135, %138 : vector<2x128xf32>
    %c5_75 = arith.constant 5 : index
    %c3_76 = arith.constant 3 : index
    %140 = memref.load %arg3[%c5_75, %c3_76] : memref<9x4xf32, #tpu.memory_space<smem>>
    %141 = vector.broadcast %140 : f32 to vector<2x128xf32>
    %142 = arith.mulf %18, %141 : vector<2x128xf32>
    %143 = arith.addf %139, %142 : vector<2x128xf32>
    %c5_77 = arith.constant 5 : index
    %144 = memref.load %arg4[%c5_77] : memref<9xf32, #tpu.memory_space<smem>>
    %145 = vector.broadcast %144 : f32 to vector<2x128xf32>
    %146 = arith.addf %143, %145 : vector<2x128xf32>
    %c0_78 = arith.constant 0 : index
    %c5_79 = arith.constant 5 : index
    %147 = arith.index_cast %6 : i32 to index
    %c0_80 = arith.constant 0 : index
    %148 = vector.load %arg6[%c0_78, %c5_79, %147, %c0_80] : memref<1x9x2x128xf32, #tpu.memory_space<vmem>>, vector<1x1x2x128xf32>
    %149 = vector.shape_cast %148 : vector<1x1x2x128xf32> to vector<2x128xf32>
    %150 = vector.shape_cast %146 : vector<2x128xf32> to vector<1x1x2x128xf32>
    tpu.vector_store %arg6[%c0_78, %c5_79, %147, %c0_80], %150 {strides = array<i32>} : memref<1x9x2x128xf32, #tpu.memory_space<vmem>>, vector<1x1x2x128xf32>,
    %c6 = arith.constant 6 : index
    %c0_81 = arith.constant 0 : index
    %151 = memref.load %arg3[%c6, %c0_81] : memref<9x4xf32, #tpu.memory_space<smem>>
    %152 = vector.broadcast %151 : f32 to vector<2x128xf32>
    %153 = arith.mulf %9, %152 : vector<2x128xf32>
    %c6_82 = arith.constant 6 : index
    %c1_83 = arith.constant 1 : index
    %154 = memref.load %arg3[%c6_82, %c1_83] : memref<9x4xf32, #tpu.memory_space<smem>>
    %155 = vector.broadcast %154 : f32 to vector<2x128xf32>
    %156 = arith.mulf %12, %155 : vector<2x128xf32>
    %157 = arith.addf %153, %156 : vector<2x128xf32>
    %c6_84 = arith.constant 6 : index
    %c2_85 = arith.constant 2 : index
    %158 = memref.load %arg3[%c6_84, %c2_85] : memref<9x4xf32, #tpu.memory_space<smem>>
    %159 = vector.broadcast %158 : f32 to vector<2x128xf32>
    %160 = arith.mulf %15, %159 : vector<2x128xf32>
    %161 = arith.addf %157, %160 : vector<2x128xf32>
    %c6_86 = arith.constant 6 : index
    %c3_87 = arith.constant 3 : index
    %162 = memref.load %arg3[%c6_86, %c3_87] : memref<9x4xf32, #tpu.memory_space<smem>>
    %163 = vector.broadcast %162 : f32 to vector<2x128xf32>
    %164 = arith.mulf %18, %163 : vector<2x128xf32>
    %165 = arith.addf %161, %164 : vector<2x128xf32>
    %c6_88 = arith.constant 6 : index
    %166 = memref.load %arg4[%c6_88] : memref<9xf32, #tpu.memory_space<smem>>
    %167 = vector.broadcast %166 : f32 to vector<2x128xf32>
    %168 = arith.addf %165, %167 : vector<2x128xf32>
    %c0_89 = arith.constant 0 : index
    %c6_90 = arith.constant 6 : index
    %169 = arith.index_cast %6 : i32 to index
    %c0_91 = arith.constant 0 : index
    %170 = vector.load %arg6[%c0_89, %c6_90, %169, %c0_91] : memref<1x9x2x128xf32, #tpu.memory_space<vmem>>, vector<1x1x2x128xf32>
    %171 = vector.shape_cast %170 : vector<1x1x2x128xf32> to vector<2x128xf32>
    %172 = vector.shape_cast %168 : vector<2x128xf32> to vector<1x1x2x128xf32>
    tpu.vector_store %arg6[%c0_89, %c6_90, %169, %c0_91], %172 {strides = array<i32>} : memref<1x9x2x128xf32, #tpu.memory_space<vmem>>, vector<1x1x2x128xf32>,
    %c7 = arith.constant 7 : index
    %c0_92 = arith.constant 0 : index
    %173 = memref.load %arg3[%c7, %c0_92] : memref<9x4xf32, #tpu.memory_space<smem>>
    %174 = vector.broadcast %173 : f32 to vector<2x128xf32>
    %175 = arith.mulf %9, %174 : vector<2x128xf32>
    %c7_93 = arith.constant 7 : index
    %c1_94 = arith.constant 1 : index
    %176 = memref.load %arg3[%c7_93, %c1_94] : memref<9x4xf32, #tpu.memory_space<smem>>
    %177 = vector.broadcast %176 : f32 to vector<2x128xf32>
    %178 = arith.mulf %12, %177 : vector<2x128xf32>
    %179 = arith.addf %175, %178 : vector<2x128xf32>
    %c7_95 = arith.constant 7 : index
    %c2_96 = arith.constant 2 : index
    %180 = memref.load %arg3[%c7_95, %c2_96] : memref<9x4xf32, #tpu.memory_space<smem>>
    %181 = vector.broadcast %180 : f32 to vector<2x128xf32>
    %182 = arith.mulf %15, %181 : vector<2x128xf32>
    %183 = arith.addf %179, %182 : vector<2x128xf32>
    %c7_97 = arith.constant 7 : index
    %c3_98 = arith.constant 3 : index
    %184 = memref.load %arg3[%c7_97, %c3_98] : memref<9x4xf32, #tpu.memory_space<smem>>
    %185 = vector.broadcast %184 : f32 to vector<2x128xf32>
    %186 = arith.mulf %18, %185 : vector<2x128xf32>
    %187 = arith.addf %183, %186 : vector<2x128xf32>
    %c7_99 = arith.constant 7 : index
    %188 = memref.load %arg4[%c7_99] : memref<9xf32, #tpu.memory_space<smem>>
    %189 = vector.broadcast %188 : f32 to vector<2x128xf32>
    %190 = arith.addf %187, %189 : vector<2x128xf32>
    %c0_100 = arith.constant 0 : index
    %c7_101 = arith.constant 7 : index
    %191 = arith.index_cast %6 : i32 to index
    %c0_102 = arith.constant 0 : index
    %192 = vector.load %arg6[%c0_100, %c7_101, %191, %c0_102] : memref<1x9x2x128xf32, #tpu.memory_space<vmem>>, vector<1x1x2x128xf32>
    %193 = vector.shape_cast %192 : vector<1x1x2x128xf32> to vector<2x128xf32>
    %194 = vector.shape_cast %190 : vector<2x128xf32> to vector<1x1x2x128xf32>
    tpu.vector_store %arg6[%c0_100, %c7_101, %191, %c0_102], %194 {strides = array<i32>} : memref<1x9x2x128xf32, #tpu.memory_space<vmem>>, vector<1x1x2x128xf32>,
    %c8 = arith.constant 8 : index
    %c0_103 = arith.constant 0 : index
    %195 = memref.load %arg3[%c8, %c0_103] : memref<9x4xf32, #tpu.memory_space<smem>>
    %196 = vector.broadcast %195 : f32 to vector<2x128xf32>
    %197 = arith.mulf %9, %196 : vector<2x128xf32>
    %c8_104 = arith.constant 8 : index
    %c1_105 = arith.constant 1 : index
    %198 = memref.load %arg3[%c8_104, %c1_105] : memref<9x4xf32, #tpu.memory_space<smem>>
    %199 = vector.broadcast %198 : f32 to vector<2x128xf32>
    %200 = arith.mulf %12, %199 : vector<2x128xf32>
    %201 = arith.addf %197, %200 : vector<2x128xf32>
    %c8_106 = arith.constant 8 : index
    %c2_107 = arith.constant 2 : index
    %202 = memref.load %arg3[%c8_106, %c2_107] : memref<9x4xf32, #tpu.memory_space<smem>>
    %203 = vector.broadcast %202 : f32 to vector<2x128xf32>
    %204 = arith.mulf %15, %203 : vector<2x128xf32>
    %205 = arith.addf %201, %204 : vector<2x128xf32>
    %c8_108 = arith.constant 8 : index
    %c3_109 = arith.constant 3 : index
    %206 = memref.load %arg3[%c8_108, %c3_109] : memref<9x4xf32, #tpu.memory_space<smem>>
    %207 = vector.broadcast %206 : f32 to vector<2x128xf32>
    %208 = arith.mulf %18, %207 : vector<2x128xf32>
    %209 = arith.addf %205, %208 : vector<2x128xf32>
    %c8_110 = arith.constant 8 : index
    %210 = memref.load %arg4[%c8_110] : memref<9xf32, #tpu.memory_space<smem>>
    %211 = vector.broadcast %210 : f32 to vector<2x128xf32>
    %212 = arith.addf %209, %211 : vector<2x128xf32>
    %c0_111 = arith.constant 0 : index
    %c8_112 = arith.constant 8 : index
    %213 = arith.index_cast %6 : i32 to index
    %c0_113 = arith.constant 0 : index
    %214 = vector.load %arg6[%c0_111, %c8_112, %213, %c0_113] : memref<1x9x2x128xf32, #tpu.memory_space<vmem>>, vector<1x1x2x128xf32>
    %215 = vector.shape_cast %214 : vector<1x1x2x128xf32> to vector<2x128xf32>
    %216 = vector.shape_cast %212 : vector<2x128xf32> to vector<1x1x2x128xf32>
    tpu.vector_store %arg6[%c0_111, %c8_112, %213, %c0_113], %216 {strides = array<i32>} : memref<1x9x2x128xf32, #tpu.memory_space<vmem>>, vector<1x1x2x128xf32>,
    %c0_114 = arith.constant 0 : index
    %217 = arith.index_cast %6 : i32 to index
    %c0_115 = arith.constant 0 : index
    %218 = vector.load %arg5[%c0_114, %217, %c0_115] : memref<1x2x128xi32, #tpu.memory_space<vmem>>, vector<1x2x128xi32>
    %219 = vector.shape_cast %218 : vector<1x2x128xi32> to vector<2x128xi32>
    %220 = arith.maximumf %36, %58 : vector<2x128xf32>
    %221 = arith.maximumf %220, %80 : vector<2x128xf32>
    %222 = arith.maximumf %221, %102 : vector<2x128xf32>
    %223 = arith.maximumf %222, %124 : vector<2x128xf32>
    %224 = arith.maximumf %223, %146 : vector<2x128xf32>
    %225 = arith.maximumf %224, %168 : vector<2x128xf32>
    %226 = arith.maximumf %225, %190 : vector<2x128xf32>
    %227 = arith.maximumf %226, %212 : vector<2x128xf32>
    %228 = arith.subf %36, %227 : vector<2x128xf32>
    %229 = math.exp %228 : vector<2x128xf32>
    %230 = arith.subf %58, %227 : vector<2x128xf32>
    %231 = math.exp %230 : vector<2x128xf32>
    %232 = arith.subf %80, %227 : vector<2x128xf32>
    %233 = math.exp %232 : vector<2x128xf32>
    %234 = arith.subf %102, %227 : vector<2x128xf32>
    %235 = math.exp %234 : vector<2x128xf32>
    %236 = arith.subf %124, %227 : vector<2x128xf32>
    %237 = math.exp %236 : vector<2x128xf32>
    %238 = arith.subf %146, %227 : vector<2x128xf32>
    %239 = math.exp %238 : vector<2x128xf32>
    %240 = arith.subf %168, %227 : vector<2x128xf32>
    %241 = math.exp %240 : vector<2x128xf32>
    %242 = arith.subf %190, %227 : vector<2x128xf32>
    %243 = math.exp %242 : vector<2x128xf32>
    %244 = arith.subf %212, %227 : vector<2x128xf32>
    %245 = math.exp %244 : vector<2x128xf32>
    %246 = arith.addf %229, %231 : vector<2x128xf32>
    %247 = arith.addf %246, %233 : vector<2x128xf32>
    %248 = arith.addf %247, %235 : vector<2x128xf32>
    %249 = arith.addf %248, %237 : vector<2x128xf32>
    %250 = arith.addf %249, %239 : vector<2x128xf32>
    %251 = arith.addf %250, %241 : vector<2x128xf32>
    %252 = arith.addf %251, %243 : vector<2x128xf32>
    %253 = arith.addf %252, %245 : vector<2x128xf32>
    %cst = arith.constant 1.000000e+00 : f32
    %254 = vector.broadcast %cst : f32 to vector<2x128xf32>
    %255 = arith.divf %254, %253 : vector<2x128xf32>
    %256 = math.log %253 : vector<2x128xf32>
    %257 = arith.addf %227, %256 : vector<2x128xf32>
    %cst_116 = arith.constant 0.000000e+00 : f32
    %258 = vector.broadcast %cst_116 : f32 to vector<2x128xf32>
    %259 = arith.mulf %229, %255 : vector<2x128xf32>
    %c0_i32_117 = arith.constant 0 : i32
    %260 = vector.broadcast %c0_i32_117 : i32 to vector<2x128xi32>
    %261 = arith.cmpi eq, %219, %260 : vector<2x128xi32>
    %262 = arith.extui %261 : vector<2x128xi1> to vector<2x128xi32>
    %263 = arith.sitofp %262 : vector<2x128xi32> to vector<2x128xf32>
    %264 = arith.mulf %259, %259 : vector<2x128xf32>
    %c0_118 = arith.constant 0 : index
    %c0_119 = arith.constant 0 : index
    %265 = vector.load %arg11[%c0_118, %c0_119] : memref<9x128xf32, #tpu.memory_space<vmem>>, vector<1x128xf32>
    %266 = arith.mulf %259, %263 : vector<2x128xf32>
    %cst_120 = arith.constant dense<0.000000e+00> : vector<128xf32>
    %267 = vector.multi_reduction <add>, %266, %cst_120 [0] : vector<2x128xf32> to vector<128xf32>
    %268 = vector.shape_cast %267 : vector<128xf32> to vector<1x128xf32>
    %269 = arith.addf %265, %268 : vector<1x128xf32>
    %c0_121 = arith.constant 0 : index
    %c0_122 = arith.constant 0 : index
    %270 = vector.load %arg11[%c0_121, %c0_122] : memref<9x128xf32, #tpu.memory_space<vmem>>, vector<1x128xf32>
    tpu.vector_store %arg11[%c0_121, %c0_122], %269 {strides = array<i32>} : memref<9x128xf32, #tpu.memory_space<vmem>>, vector<1x128xf32>,
    %c0_123 = arith.constant 0 : index
    %c0_124 = arith.constant 0 : index
    %271 = vector.load %arg12[%c0_123, %c0_124] : memref<9x128xf32, #tpu.memory_space<vmem>>, vector<1x128xf32>
    %cst_125 = arith.constant dense<0.000000e+00> : vector<128xf32>
    %272 = vector.multi_reduction <add>, %264, %cst_125 [0] : vector<2x128xf32> to vector<128xf32>
    %273 = vector.shape_cast %272 : vector<128xf32> to vector<1x128xf32>
    %274 = arith.addf %271, %273 : vector<1x128xf32>
    %c0_126 = arith.constant 0 : index
    %c0_127 = arith.constant 0 : index
    %275 = vector.load %arg12[%c0_126, %c0_127] : memref<9x128xf32, #tpu.memory_space<vmem>>, vector<1x128xf32>
    tpu.vector_store %arg12[%c0_126, %c0_127], %274 {strides = array<i32>} : memref<9x128xf32, #tpu.memory_space<vmem>>, vector<1x128xf32>,
    %c0_128 = arith.constant 0 : index
    %c0_129 = arith.constant 0 : index
    %276 = vector.load %arg13[%c0_128, %c0_129] : memref<9x128xf32, #tpu.memory_space<vmem>>, vector<1x128xf32>
    %cst_130 = arith.constant dense<0.000000e+00> : vector<128xf32>
    %277 = vector.multi_reduction <add>, %263, %cst_130 [0] : vector<2x128xf32> to vector<128xf32>
    %278 = vector.shape_cast %277 : vector<128xf32> to vector<1x128xf32>
    %279 = arith.addf %276, %278 : vector<1x128xf32>
    %c0_131 = arith.constant 0 : index
    %c0_132 = arith.constant 0 : index
    %280 = vector.load %arg13[%c0_131, %c0_132] : memref<9x128xf32, #tpu.memory_space<vmem>>, vector<1x128xf32>
    tpu.vector_store %arg13[%c0_131, %c0_132], %279 {strides = array<i32>} : memref<9x128xf32, #tpu.memory_space<vmem>>, vector<1x128xf32>,
    %281 = arith.mulf %36, %263 : vector<2x128xf32>
    %282 = arith.addf %258, %281 : vector<2x128xf32>
    %283 = arith.mulf %231, %255 : vector<2x128xf32>
    %c1_i32_133 = arith.constant 1 : i32
    %284 = vector.broadcast %c1_i32_133 : i32 to vector<2x128xi32>
    %285 = arith.cmpi eq, %219, %284 : vector<2x128xi32>
    %286 = arith.extui %285 : vector<2x128xi1> to vector<2x128xi32>
    %287 = arith.sitofp %286 : vector<2x128xi32> to vector<2x128xf32>
    %288 = arith.mulf %283, %283 : vector<2x128xf32>
    %c1_134 = arith.constant 1 : index
    %c0_135 = arith.constant 0 : index
    %289 = vector.load %arg11[%c1_134, %c0_135] : memref<9x128xf32, #tpu.memory_space<vmem>>, vector<1x128xf32>
    %290 = arith.mulf %283, %287 : vector<2x128xf32>
    %cst_136 = arith.constant dense<0.000000e+00> : vector<128xf32>
    %291 = vector.multi_reduction <add>, %290, %cst_136 [0] : vector<2x128xf32> to vector<128xf32>
    %292 = vector.shape_cast %291 : vector<128xf32> to vector<1x128xf32>
    %293 = arith.addf %289, %292 : vector<1x128xf32>
    %c1_137 = arith.constant 1 : index
    %c0_138 = arith.constant 0 : index
    %294 = vector.load %arg11[%c1_137, %c0_138] : memref<9x128xf32, #tpu.memory_space<vmem>>, vector<1x128xf32>
    tpu.vector_store %arg11[%c1_137, %c0_138], %293 {strides = array<i32>} : memref<9x128xf32, #tpu.memory_space<vmem>>, vector<1x128xf32>,
    %c1_139 = arith.constant 1 : index
    %c0_140 = arith.constant 0 : index
    %295 = vector.load %arg12[%c1_139, %c0_140] : memref<9x128xf32, #tpu.memory_space<vmem>>, vector<1x128xf32>
    %cst_141 = arith.constant dense<0.000000e+00> : vector<128xf32>
    %296 = vector.multi_reduction <add>, %288, %cst_141 [0] : vector<2x128xf32> to vector<128xf32>
    %297 = vector.shape_cast %296 : vector<128xf32> to vector<1x128xf32>
    %298 = arith.addf %295, %297 : vector<1x128xf32>
    %c1_142 = arith.constant 1 : index
    %c0_143 = arith.constant 0 : index
    %299 = vector.load %arg12[%c1_142, %c0_143] : memref<9x128xf32, #tpu.memory_space<vmem>>, vector<1x128xf32>
    tpu.vector_store %arg12[%c1_142, %c0_143], %298 {strides = array<i32>} : memref<9x128xf32, #tpu.memory_space<vmem>>, vector<1x128xf32>,
    %c1_144 = arith.constant 1 : index
    %c0_145 = arith.constant 0 : index
    %300 = vector.load %arg13[%c1_144, %c0_145] : memref<9x128xf32, #tpu.memory_space<vmem>>, vector<1x128xf32>
    %cst_146 = arith.constant dense<0.000000e+00> : vector<128xf32>
    %301 = vector.multi_reduction <add>, %287, %cst_146 [0] : vector<2x128xf32> to vector<128xf32>
    %302 = vector.shape_cast %301 : vector<128xf32> to vector<1x128xf32>
    %303 = arith.addf %300, %302 : vector<1x128xf32>
    %c1_147 = arith.constant 1 : index
    %c0_148 = arith.constant 0 : index
    %304 = vector.load %arg13[%c1_147, %c0_148] : memref<9x128xf32, #tpu.memory_space<vmem>>, vector<1x128xf32>
    tpu.vector_store %arg13[%c1_147, %c0_148], %303 {strides = array<i32>} : memref<9x128xf32, #tpu.memory_space<vmem>>, vector<1x128xf32>,
    %305 = arith.mulf %58, %287 : vector<2x128xf32>
    %306 = arith.addf %282, %305 : vector<2x128xf32>
    %307 = arith.mulf %233, %255 : vector<2x128xf32>
    %c2_i32_149 = arith.constant 2 : i32
    %308 = vector.broadcast %c2_i32_149 : i32 to vector<2x128xi32>
    %309 = arith.cmpi eq, %219, %308 : vector<2x128xi32>
    %310 = arith.extui %309 : vector<2x128xi1> to vector<2x128xi32>
    %311 = arith.sitofp %310 : vector<2x128xi32> to vector<2x128xf32>
    %312 = arith.mulf %307, %307 : vector<2x128xf32>
    %c2_150 = arith.constant 2 : index
    %c0_151 = arith.constant 0 : index
    %313 = vector.load %arg11[%c2_150, %c0_151] : memref<9x128xf32, #tpu.memory_space<vmem>>, vector<1x128xf32>
    %314 = arith.mulf %307, %311 : vector<2x128xf32>
    %cst_152 = arith.constant dense<0.000000e+00> : vector<128xf32>
    %315 = vector.multi_reduction <add>, %314, %cst_152 [0] : vector<2x128xf32> to vector<128xf32>
    %316 = vector.shape_cast %315 : vector<128xf32> to vector<1x128xf32>
    %317 = arith.addf %313, %316 : vector<1x128xf32>
    %c2_153 = arith.constant 2 : index
    %c0_154 = arith.constant 0 : index
    %318 = vector.load %arg11[%c2_153, %c0_154] : memref<9x128xf32, #tpu.memory_space<vmem>>, vector<1x128xf32>
    tpu.vector_store %arg11[%c2_153, %c0_154], %317 {strides = array<i32>} : memref<9x128xf32, #tpu.memory_space<vmem>>, vector<1x128xf32>,
    %c2_155 = arith.constant 2 : index
    %c0_156 = arith.constant 0 : index
    %319 = vector.load %arg12[%c2_155, %c0_156] : memref<9x128xf32, #tpu.memory_space<vmem>>, vector<1x128xf32>
    %cst_157 = arith.constant dense<0.000000e+00> : vector<128xf32>
    %320 = vector.multi_reduction <add>, %312, %cst_157 [0] : vector<2x128xf32> to vector<128xf32>
    %321 = vector.shape_cast %320 : vector<128xf32> to vector<1x128xf32>
    %322 = arith.addf %319, %321 : vector<1x128xf32>
    %c2_158 = arith.constant 2 : index
    %c0_159 = arith.constant 0 : index
    %323 = vector.load %arg12[%c2_158, %c0_159] : memref<9x128xf32, #tpu.memory_space<vmem>>, vector<1x128xf32>
    tpu.vector_store %arg12[%c2_158, %c0_159], %322 {strides = array<i32>} : memref<9x128xf32, #tpu.memory_space<vmem>>, vector<1x128xf32>,
    %c2_160 = arith.constant 2 : index
    %c0_161 = arith.constant 0 : index
    %324 = vector.load %arg13[%c2_160, %c0_161] : memref<9x128xf32, #tpu.memory_space<vmem>>, vector<1x128xf32>
    %cst_162 = arith.constant dense<0.000000e+00> : vector<128xf32>
    %325 = vector.multi_reduction <add>, %311, %cst_162 [0] : vector<2x128xf32> to vector<128xf32>
    %326 = vector.shape_cast %325 : vector<128xf32> to vector<1x128xf32>
    %327 = arith.addf %324, %326 : vector<1x128xf32>
    %c2_163 = arith.constant 2 : index
    %c0_164 = arith.constant 0 : index
    %328 = vector.load %arg13[%c2_163, %c0_164] : memref<9x128xf32, #tpu.memory_space<vmem>>, vector<1x128xf32>
    tpu.vector_store %arg13[%c2_163, %c0_164], %327 {strides = array<i32>} : memref<9x128xf32, #tpu.memory_space<vmem>>, vector<1x128xf32>,
    %329 = arith.mulf %80, %311 : vector<2x128xf32>
    %330 = arith.addf %306, %329 : vector<2x128xf32>
    %331 = arith.mulf %235, %255 : vector<2x128xf32>
    %c3_i32 = arith.constant 3 : i32
    %332 = vector.broadcast %c3_i32 : i32 to vector<2x128xi32>
    %333 = arith.cmpi eq, %219, %332 : vector<2x128xi32>
    %334 = arith.extui %333 : vector<2x128xi1> to vector<2x128xi32>
    %335 = arith.sitofp %334 : vector<2x128xi32> to vector<2x128xf32>
    %336 = arith.mulf %331, %331 : vector<2x128xf32>
    %c3_165 = arith.constant 3 : index
    %c0_166 = arith.constant 0 : index
    %337 = vector.load %arg11[%c3_165, %c0_166] : memref<9x128xf32, #tpu.memory_space<vmem>>, vector<1x128xf32>
    %338 = arith.mulf %331, %335 : vector<2x128xf32>
    %cst_167 = arith.constant dense<0.000000e+00> : vector<128xf32>
    %339 = vector.multi_reduction <add>, %338, %cst_167 [0] : vector<2x128xf32> to vector<128xf32>
    %340 = vector.shape_cast %339 : vector<128xf32> to vector<1x128xf32>
    %341 = arith.addf %337, %340 : vector<1x128xf32>
    %c3_168 = arith.constant 3 : index
    %c0_169 = arith.constant 0 : index
    %342 = vector.load %arg11[%c3_168, %c0_169] : memref<9x128xf32, #tpu.memory_space<vmem>>, vector<1x128xf32>
    tpu.vector_store %arg11[%c3_168, %c0_169], %341 {strides = array<i32>} : memref<9x128xf32, #tpu.memory_space<vmem>>, vector<1x128xf32>,
    %c3_170 = arith.constant 3 : index
    %c0_171 = arith.constant 0 : index
    %343 = vector.load %arg12[%c3_170, %c0_171] : memref<9x128xf32, #tpu.memory_space<vmem>>, vector<1x128xf32>
    %cst_172 = arith.constant dense<0.000000e+00> : vector<128xf32>
    %344 = vector.multi_reduction <add>, %336, %cst_172 [0] : vector<2x128xf32> to vector<128xf32>
    %345 = vector.shape_cast %344 : vector<128xf32> to vector<1x128xf32>
    %346 = arith.addf %343, %345 : vector<1x128xf32>
    %c3_173 = arith.constant 3 : index
    %c0_174 = arith.constant 0 : index
    %347 = vector.load %arg12[%c3_173, %c0_174] : memref<9x128xf32, #tpu.memory_space<vmem>>, vector<1x128xf32>
    tpu.vector_store %arg12[%c3_173, %c0_174], %346 {strides = array<i32>} : memref<9x128xf32, #tpu.memory_space<vmem>>, vector<1x128xf32>,
    %c3_175 = arith.constant 3 : index
    %c0_176 = arith.constant 0 : index
    %348 = vector.load %arg13[%c3_175, %c0_176] : memref<9x128xf32, #tpu.memory_space<vmem>>, vector<1x128xf32>
    %cst_177 = arith.constant dense<0.000000e+00> : vector<128xf32>
    %349 = vector.multi_reduction <add>, %335, %cst_177 [0] : vector<2x128xf32> to vector<128xf32>
    %350 = vector.shape_cast %349 : vector<128xf32> to vector<1x128xf32>
    %351 = arith.addf %348, %350 : vector<1x128xf32>
    %c3_178 = arith.constant 3 : index
    %c0_179 = arith.constant 0 : index
    %352 = vector.load %arg13[%c3_178, %c0_179] : memref<9x128xf32, #tpu.memory_space<vmem>>, vector<1x128xf32>
    tpu.vector_store %arg13[%c3_178, %c0_179], %351 {strides = array<i32>} : memref<9x128xf32, #tpu.memory_space<vmem>>, vector<1x128xf32>,
    %353 = arith.mulf %102, %335 : vector<2x128xf32>
    %354 = arith.addf %330, %353 : vector<2x128xf32>
    %355 = arith.mulf %237, %255 : vector<2x128xf32>
    %c4_i32 = arith.constant 4 : i32
    %356 = vector.broadcast %c4_i32 : i32 to vector<2x128xi32>
    %357 = arith.cmpi eq, %219, %356 : vector<2x128xi32>
    %358 = arith.extui %357 : vector<2x128xi1> to vector<2x128xi32>
    %359 = arith.sitofp %358 : vector<2x128xi32> to vector<2x128xf32>
    %360 = arith.mulf %355, %355 : vector<2x128xf32>
    %c4_180 = arith.constant 4 : index
    %c0_181 = arith.constant 0 : index
    %361 = vector.load %arg11[%c4_180, %c0_181] : memref<9x128xf32, #tpu.memory_space<vmem>>, vector<1x128xf32>
    %362 = arith.mulf %355, %359 : vector<2x128xf32>
    %cst_182 = arith.constant dense<0.000000e+00> : vector<128xf32>
    %363 = vector.multi_reduction <add>, %362, %cst_182 [0] : vector<2x128xf32> to vector<128xf32>
    %364 = vector.shape_cast %363 : vector<128xf32> to vector<1x128xf32>
    %365 = arith.addf %361, %364 : vector<1x128xf32>
    %c4_183 = arith.constant 4 : index
    %c0_184 = arith.constant 0 : index
    %366 = vector.load %arg11[%c4_183, %c0_184] : memref<9x128xf32, #tpu.memory_space<vmem>>, vector<1x128xf32>
    tpu.vector_store %arg11[%c4_183, %c0_184], %365 {strides = array<i32>} : memref<9x128xf32, #tpu.memory_space<vmem>>, vector<1x128xf32>,
    %c4_185 = arith.constant 4 : index
    %c0_186 = arith.constant 0 : index
    %367 = vector.load %arg12[%c4_185, %c0_186] : memref<9x128xf32, #tpu.memory_space<vmem>>, vector<1x128xf32>
    %cst_187 = arith.constant dense<0.000000e+00> : vector<128xf32>
    %368 = vector.multi_reduction <add>, %360, %cst_187 [0] : vector<2x128xf32> to vector<128xf32>
    %369 = vector.shape_cast %368 : vector<128xf32> to vector<1x128xf32>
    %370 = arith.addf %367, %369 : vector<1x128xf32>
    %c4_188 = arith.constant 4 : index
    %c0_189 = arith.constant 0 : index
    %371 = vector.load %arg12[%c4_188, %c0_189] : memref<9x128xf32, #tpu.memory_space<vmem>>, vector<1x128xf32>
    tpu.vector_store %arg12[%c4_188, %c0_189], %370 {strides = array<i32>} : memref<9x128xf32, #tpu.memory_space<vmem>>, vector<1x128xf32>,
    %c4_190 = arith.constant 4 : index
    %c0_191 = arith.constant 0 : index
    %372 = vector.load %arg13[%c4_190, %c0_191] : memref<9x128xf32, #tpu.memory_space<vmem>>, vector<1x128xf32>
    %cst_192 = arith.constant dense<0.000000e+00> : vector<128xf32>
    %373 = vector.multi_reduction <add>, %359, %cst_192 [0] : vector<2x128xf32> to vector<128xf32>
    %374 = vector.shape_cast %373 : vector<128xf32> to vector<1x128xf32>
    %375 = arith.addf %372, %374 : vector<1x128xf32>
    %c4_193 = arith.constant 4 : index
    %c0_194 = arith.constant 0 : index
    %376 = vector.load %arg13[%c4_193, %c0_194] : memref<9x128xf32, #tpu.memory_space<vmem>>, vector<1x128xf32>
    tpu.vector_store %arg13[%c4_193, %c0_194], %375 {strides = array<i32>} : memref<9x128xf32, #tpu.memory_space<vmem>>, vector<1x128xf32>,
    %377 = arith.mulf %124, %359 : vector<2x128xf32>
    %378 = arith.addf %354, %377 : vector<2x128xf32>
    %379 = arith.mulf %239, %255 : vector<2x128xf32>
    %c5_i32 = arith.constant 5 : i32
    %380 = vector.broadcast %c5_i32 : i32 to vector<2x128xi32>
    %381 = arith.cmpi eq, %219, %380 : vector<2x128xi32>
    %382 = arith.extui %381 : vector<2x128xi1> to vector<2x128xi32>
    %383 = arith.sitofp %382 : vector<2x128xi32> to vector<2x128xf32>
    %384 = arith.mulf %379, %379 : vector<2x128xf32>
    %c5_195 = arith.constant 5 : index
    %c0_196 = arith.constant 0 : index
    %385 = vector.load %arg11[%c5_195, %c0_196] : memref<9x128xf32, #tpu.memory_space<vmem>>, vector<1x128xf32>
    %386 = arith.mulf %379, %383 : vector<2x128xf32>
    %cst_197 = arith.constant dense<0.000000e+00> : vector<128xf32>
    %387 = vector.multi_reduction <add>, %386, %cst_197 [0] : vector<2x128xf32> to vector<128xf32>
    %388 = vector.shape_cast %387 : vector<128xf32> to vector<1x128xf32>
    %389 = arith.addf %385, %388 : vector<1x128xf32>
    %c5_198 = arith.constant 5 : index
    %c0_199 = arith.constant 0 : index
    %390 = vector.load %arg11[%c5_198, %c0_199] : memref<9x128xf32, #tpu.memory_space<vmem>>, vector<1x128xf32>
    tpu.vector_store %arg11[%c5_198, %c0_199], %389 {strides = array<i32>} : memref<9x128xf32, #tpu.memory_space<vmem>>, vector<1x128xf32>,
    %c5_200 = arith.constant 5 : index
    %c0_201 = arith.constant 0 : index
    %391 = vector.load %arg12[%c5_200, %c0_201] : memref<9x128xf32, #tpu.memory_space<vmem>>, vector<1x128xf32>
    %cst_202 = arith.constant dense<0.000000e+00> : vector<128xf32>
    %392 = vector.multi_reduction <add>, %384, %cst_202 [0] : vector<2x128xf32> to vector<128xf32>
    %393 = vector.shape_cast %392 : vector<128xf32> to vector<1x128xf32>
    %394 = arith.addf %391, %393 : vector<1x128xf32>
    %c5_203 = arith.constant 5 : index
    %c0_204 = arith.constant 0 : index
    %395 = vector.load %arg12[%c5_203, %c0_204] : memref<9x128xf32, #tpu.memory_space<vmem>>, vector<1x128xf32>
    tpu.vector_store %arg12[%c5_203, %c0_204], %394 {strides = array<i32>} : memref<9x128xf32, #tpu.memory_space<vmem>>, vector<1x128xf32>,
    %c5_205 = arith.constant 5 : index
    %c0_206 = arith.constant 0 : index
    %396 = vector.load %arg13[%c5_205, %c0_206] : memref<9x128xf32, #tpu.memory_space<vmem>>, vector<1x128xf32>
    %cst_207 = arith.constant dense<0.000000e+00> : vector<128xf32>
    %397 = vector.multi_reduction <add>, %383, %cst_207 [0] : vector<2x128xf32> to vector<128xf32>
    %398 = vector.shape_cast %397 : vector<128xf32> to vector<1x128xf32>
    %399 = arith.addf %396, %398 : vector<1x128xf32>
    %c5_208 = arith.constant 5 : index
    %c0_209 = arith.constant 0 : index
    %400 = vector.load %arg13[%c5_208, %c0_209] : memref<9x128xf32, #tpu.memory_space<vmem>>, vector<1x128xf32>
    tpu.vector_store %arg13[%c5_208, %c0_209], %399 {strides = array<i32>} : memref<9x128xf32, #tpu.memory_space<vmem>>, vector<1x128xf32>,
    %401 = arith.mulf %146, %383 : vector<2x128xf32>
    %402 = arith.addf %378, %401 : vector<2x128xf32>
    %403 = arith.mulf %241, %255 : vector<2x128xf32>
    %c6_i32 = arith.constant 6 : i32
    %404 = vector.broadcast %c6_i32 : i32 to vector<2x128xi32>
    %405 = arith.cmpi eq, %219, %404 : vector<2x128xi32>
    %406 = arith.extui %405 : vector<2x128xi1> to vector<2x128xi32>
    %407 = arith.sitofp %406 : vector<2x128xi32> to vector<2x128xf32>
    %408 = arith.mulf %403, %403 : vector<2x128xf32>
    %c6_210 = arith.constant 6 : index
    %c0_211 = arith.constant 0 : index
    %409 = vector.load %arg11[%c6_210, %c0_211] : memref<9x128xf32, #tpu.memory_space<vmem>>, vector<1x128xf32>
    %410 = arith.mulf %403, %407 : vector<2x128xf32>
    %cst_212 = arith.constant dense<0.000000e+00> : vector<128xf32>
    %411 = vector.multi_reduction <add>, %410, %cst_212 [0] : vector<2x128xf32> to vector<128xf32>
    %412 = vector.shape_cast %411 : vector<128xf32> to vector<1x128xf32>
    %413 = arith.addf %409, %412 : vector<1x128xf32>
    %c6_213 = arith.constant 6 : index
    %c0_214 = arith.constant 0 : index
    %414 = vector.load %arg11[%c6_213, %c0_214] : memref<9x128xf32, #tpu.memory_space<vmem>>, vector<1x128xf32>
    tpu.vector_store %arg11[%c6_213, %c0_214], %413 {strides = array<i32>} : memref<9x128xf32, #tpu.memory_space<vmem>>, vector<1x128xf32>,
    %c6_215 = arith.constant 6 : index
    %c0_216 = arith.constant 0 : index
    %415 = vector.load %arg12[%c6_215, %c0_216] : memref<9x128xf32, #tpu.memory_space<vmem>>, vector<1x128xf32>
    %cst_217 = arith.constant dense<0.000000e+00> : vector<128xf32>
    %416 = vector.multi_reduction <add>, %408, %cst_217 [0] : vector<2x128xf32> to vector<128xf32>
    %417 = vector.shape_cast %416 : vector<128xf32> to vector<1x128xf32>
    %418 = arith.addf %415, %417 : vector<1x128xf32>
    %c6_218 = arith.constant 6 : index
    %c0_219 = arith.constant 0 : index
    %419 = vector.load %arg12[%c6_218, %c0_219] : memref<9x128xf32, #tpu.memory_space<vmem>>, vector<1x128xf32>
    tpu.vector_store %arg12[%c6_218, %c0_219], %418 {strides = array<i32>} : memref<9x128xf32, #tpu.memory_space<vmem>>, vector<1x128xf32>,
    %c6_220 = arith.constant 6 : index
    %c0_221 = arith.constant 0 : index
    %420 = vector.load %arg13[%c6_220, %c0_221] : memref<9x128xf32, #tpu.memory_space<vmem>>, vector<1x128xf32>
    %cst_222 = arith.constant dense<0.000000e+00> : vector<128xf32>
    %421 = vector.multi_reduction <add>, %407, %cst_222 [0] : vector<2x128xf32> to vector<128xf32>
    %422 = vector.shape_cast %421 : vector<128xf32> to vector<1x128xf32>
    %423 = arith.addf %420, %422 : vector<1x128xf32>
    %c6_223 = arith.constant 6 : index
    %c0_224 = arith.constant 0 : index
    %424 = vector.load %arg13[%c6_223, %c0_224] : memref<9x128xf32, #tpu.memory_space<vmem>>, vector<1x128xf32>
    tpu.vector_store %arg13[%c6_223, %c0_224], %423 {strides = array<i32>} : memref<9x128xf32, #tpu.memory_space<vmem>>, vector<1x128xf32>,
    %425 = arith.mulf %168, %407 : vector<2x128xf32>
    %426 = arith.addf %402, %425 : vector<2x128xf32>
    %427 = arith.mulf %243, %255 : vector<2x128xf32>
    %c7_i32 = arith.constant 7 : i32
    %428 = vector.broadcast %c7_i32 : i32 to vector<2x128xi32>
    %429 = arith.cmpi eq, %219, %428 : vector<2x128xi32>
    %430 = arith.extui %429 : vector<2x128xi1> to vector<2x128xi32>
    %431 = arith.sitofp %430 : vector<2x128xi32> to vector<2x128xf32>
    %432 = arith.mulf %427, %427 : vector<2x128xf32>
    %c7_225 = arith.constant 7 : index
    %c0_226 = arith.constant 0 : index
    %433 = vector.load %arg11[%c7_225, %c0_226] : memref<9x128xf32, #tpu.memory_space<vmem>>, vector<1x128xf32>
    %434 = arith.mulf %427, %431 : vector<2x128xf32>
    %cst_227 = arith.constant dense<0.000000e+00> : vector<128xf32>
    %435 = vector.multi_reduction <add>, %434, %cst_227 [0] : vector<2x128xf32> to vector<128xf32>
    %436 = vector.shape_cast %435 : vector<128xf32> to vector<1x128xf32>
    %437 = arith.addf %433, %436 : vector<1x128xf32>
    %c7_228 = arith.constant 7 : index
    %c0_229 = arith.constant 0 : index
    %438 = vector.load %arg11[%c7_228, %c0_229] : memref<9x128xf32, #tpu.memory_space<vmem>>, vector<1x128xf32>
    tpu.vector_store %arg11[%c7_228, %c0_229], %437 {strides = array<i32>} : memref<9x128xf32, #tpu.memory_space<vmem>>, vector<1x128xf32>,
    %c7_230 = arith.constant 7 : index
    %c0_231 = arith.constant 0 : index
    %439 = vector.load %arg12[%c7_230, %c0_231] : memref<9x128xf32, #tpu.memory_space<vmem>>, vector<1x128xf32>
    %cst_232 = arith.constant dense<0.000000e+00> : vector<128xf32>
    %440 = vector.multi_reduction <add>, %432, %cst_232 [0] : vector<2x128xf32> to vector<128xf32>
    %441 = vector.shape_cast %440 : vector<128xf32> to vector<1x128xf32>
    %442 = arith.addf %439, %441 : vector<1x128xf32>
    %c7_233 = arith.constant 7 : index
    %c0_234 = arith.constant 0 : index
    %443 = vector.load %arg12[%c7_233, %c0_234] : memref<9x128xf32, #tpu.memory_space<vmem>>, vector<1x128xf32>
    tpu.vector_store %arg12[%c7_233, %c0_234], %442 {strides = array<i32>} : memref<9x128xf32, #tpu.memory_space<vmem>>, vector<1x128xf32>,
    %c7_235 = arith.constant 7 : index
    %c0_236 = arith.constant 0 : index
    %444 = vector.load %arg13[%c7_235, %c0_236] : memref<9x128xf32, #tpu.memory_space<vmem>>, vector<1x128xf32>
    %cst_237 = arith.constant dense<0.000000e+00> : vector<128xf32>
    %445 = vector.multi_reduction <add>, %431, %cst_237 [0] : vector<2x128xf32> to vector<128xf32>
    %446 = vector.shape_cast %445 : vector<128xf32> to vector<1x128xf32>
    %447 = arith.addf %444, %446 : vector<1x128xf32>
    %c7_238 = arith.constant 7 : index
    %c0_239 = arith.constant 0 : index
    %448 = vector.load %arg13[%c7_238, %c0_239] : memref<9x128xf32, #tpu.memory_space<vmem>>, vector<1x128xf32>
    tpu.vector_store %arg13[%c7_238, %c0_239], %447 {strides = array<i32>} : memref<9x128xf32, #tpu.memory_space<vmem>>, vector<1x128xf32>,
    %449 = arith.mulf %190, %431 : vector<2x128xf32>
    %450 = arith.addf %426, %449 : vector<2x128xf32>
    %451 = arith.mulf %245, %255 : vector<2x128xf32>
    %c8_i32 = arith.constant 8 : i32
    %452 = vector.broadcast %c8_i32 : i32 to vector<2x128xi32>
    %453 = arith.cmpi eq, %219, %452 : vector<2x128xi32>
    %454 = arith.extui %453 : vector<2x128xi1> to vector<2x128xi32>
    %455 = arith.sitofp %454 : vector<2x128xi32> to vector<2x128xf32>
    %456 = arith.mulf %451, %451 : vector<2x128xf32>
    %c8_240 = arith.constant 8 : index
    %c0_241 = arith.constant 0 : index
    %457 = vector.load %arg11[%c8_240, %c0_241] : memref<9x128xf32, #tpu.memory_space<vmem>>, vector<1x128xf32>
    %458 = arith.mulf %451, %455 : vector<2x128xf32>
    %cst_242 = arith.constant dense<0.000000e+00> : vector<128xf32>
    %459 = vector.multi_reduction <add>, %458, %cst_242 [0] : vector<2x128xf32> to vector<128xf32>
    %460 = vector.shape_cast %459 : vector<128xf32> to vector<1x128xf32>
    %461 = arith.addf %457, %460 : vector<1x128xf32>
    %c8_243 = arith.constant 8 : index
    %c0_244 = arith.constant 0 : index
    %462 = vector.load %arg11[%c8_243, %c0_244] : memref<9x128xf32, #tpu.memory_space<vmem>>, vector<1x128xf32>
    tpu.vector_store %arg11[%c8_243, %c0_244], %461 {strides = array<i32>} : memref<9x128xf32, #tpu.memory_space<vmem>>, vector<1x128xf32>,
    %c8_245 = arith.constant 8 : index
    %c0_246 = arith.constant 0 : index
    %463 = vector.load %arg12[%c8_245, %c0_246] : memref<9x128xf32, #tpu.memory_space<vmem>>, vector<1x128xf32>
    %cst_247 = arith.constant dense<0.000000e+00> : vector<128xf32>
    %464 = vector.multi_reduction <add>, %456, %cst_247 [0] : vector<2x128xf32> to vector<128xf32>
    %465 = vector.shape_cast %464 : vector<128xf32> to vector<1x128xf32>
    %466 = arith.addf %463, %465 : vector<1x128xf32>
    %c8_248 = arith.constant 8 : index
    %c0_249 = arith.constant 0 : index
    %467 = vector.load %arg12[%c8_248, %c0_249] : memref<9x128xf32, #tpu.memory_space<vmem>>, vector<1x128xf32>
    tpu.vector_store %arg12[%c8_248, %c0_249], %466 {strides = array<i32>} : memref<9x128xf32, #tpu.memory_space<vmem>>, vector<1x128xf32>,
    %c8_250 = arith.constant 8 : index
    %c0_251 = arith.constant 0 : index
    %468 = vector.load %arg13[%c8_250, %c0_251] : memref<9x128xf32, #tpu.memory_space<vmem>>, vector<1x128xf32>
    %cst_252 = arith.constant dense<0.000000e+00> : vector<128xf32>
    %469 = vector.multi_reduction <add>, %455, %cst_252 [0] : vector<2x128xf32> to vector<128xf32>
    %470 = vector.shape_cast %469 : vector<128xf32> to vector<1x128xf32>
    %471 = arith.addf %468, %470 : vector<1x128xf32>
    %c8_253 = arith.constant 8 : index
    %c0_254 = arith.constant 0 : index
    %472 = vector.load %arg13[%c8_253, %c0_254] : memref<9x128xf32, #tpu.memory_space<vmem>>, vector<1x128xf32>
    tpu.vector_store %arg13[%c8_253, %c0_254], %471 {strides = array<i32>} : memref<9x128xf32, #tpu.memory_space<vmem>>, vector<1x128xf32>,
    %473 = arith.mulf %212, %455 : vector<2x128xf32>
    %474 = arith.addf %450, %473 : vector<2x128xf32>
    %475 = arith.subf %257, %474 : vector<2x128xf32>
    %c0_255 = arith.constant 0 : index
    %c0_256 = arith.constant 0 : index
    %476 = vector.load %arg14[%c0_255, %c0_256] : memref<1x128xf32, #tpu.memory_space<vmem>>, vector<1x128xf32>
    %cst_257 = arith.constant dense<0.000000e+00> : vector<128xf32>
    %477 = vector.multi_reduction <add>, %475, %cst_257 [0] : vector<2x128xf32> to vector<128xf32>
    %478 = vector.shape_cast %477 : vector<128xf32> to vector<1x128xf32>
    %479 = arith.addf %476, %478 : vector<1x128xf32>
    %c0_258 = arith.constant 0 : index
    %c0_259 = arith.constant 0 : index
    %480 = vector.load %arg14[%c0_258, %c0_259] : memref<1x128xf32, #tpu.memory_space<vmem>>, vector<1x128xf32>
    tpu.vector_store %arg14[%c0_258, %c0_259], %479 {strides = array<i32>} : memref<1x128xf32, #tpu.memory_space<vmem>>, vector<1x128xf32>,
    %c1_i32_260 = arith.constant 1 : i32
    %c0_i32_261 = arith.constant 0 : i32
    %481 = arith.cmpi eq, %arg1, %c0_i32_261 : i32
    %482 = arith.extui %481 : i1 to i32
    %c0_i32_262 = arith.constant 0 : i32
    %483 = arith.cmpi ne, %482, %c0_i32_262 : i32
    scf.if %483 {
      %c0_263 = arith.constant 0 : index
      %c0_264 = arith.constant 0 : index
      %484 = vector.load %arg11[%c0_263, %c0_264] : memref<9x128xf32, #tpu.memory_space<vmem>>, vector<9x128xf32>
      %cst_265 = arith.constant dense<0.000000e+00> : vector<9xf32>
      %485 = vector.multi_reduction <add>, %484, %cst_265 [1] : vector<9x128xf32> to vector<9xf32>
      %486 = vector.shape_cast %485 : vector<9xf32> to vector<9x1xf32>
      %c0_266 = arith.constant 0 : index
      %c0_267 = arith.constant 0 : index
      %c0_268 = arith.constant 0 : index
      %487 = vector.load %arg7[%c0_266, %c0_267, %c0_268] : memref<1x9x1xf32, #tpu.memory_space<vmem>>, vector<1x9x1xf32>
      %488 = vector.shape_cast %487 : vector<1x9x1xf32> to vector<9x1xf32>
      %489 = vector.shape_cast %486 : vector<9x1xf32> to vector<1x9x1xf32>
      tpu.vector_store %arg7[%c0_266, %c0_267, %c0_268], %489 {strides = array<i32>} : memref<1x9x1xf32, #tpu.memory_space<vmem>>, vector<1x9x1xf32>,
      %c0_269 = arith.constant 0 : index
      %c0_270 = arith.constant 0 : index
      %490 = vector.load %arg12[%c0_269, %c0_270] : memref<9x128xf32, #tpu.memory_space<vmem>>, vector<9x128xf32>
      %cst_271 = arith.constant dense<0.000000e+00> : vector<9xf32>
      %491 = vector.multi_reduction <add>, %490, %cst_271 [1] : vector<9x128xf32> to vector<9xf32>
      %492 = vector.shape_cast %491 : vector<9xf32> to vector<9x1xf32>
      %c0_272 = arith.constant 0 : index
      %c0_273 = arith.constant 0 : index
      %c0_274 = arith.constant 0 : index
      %493 = vector.load %arg8[%c0_272, %c0_273, %c0_274] : memref<1x9x1xf32, #tpu.memory_space<vmem>>, vector<1x9x1xf32>
      %494 = vector.shape_cast %493 : vector<1x9x1xf32> to vector<9x1xf32>
      %495 = vector.shape_cast %492 : vector<9x1xf32> to vector<1x9x1xf32>
      tpu.vector_store %arg8[%c0_272, %c0_273, %c0_274], %495 {strides = array<i32>} : memref<1x9x1xf32, #tpu.memory_space<vmem>>, vector<1x9x1xf32>,
      %c0_275 = arith.constant 0 : index
      %c0_276 = arith.constant 0 : index
      %496 = vector.load %arg13[%c0_275, %c0_276] : memref<9x128xf32, #tpu.memory_space<vmem>>, vector<9x128xf32>
      %cst_277 = arith.constant dense<0.000000e+00> : vector<9xf32>
      %497 = vector.multi_reduction <add>, %496, %cst_277 [1] : vector<9x128xf32> to vector<9xf32>
      %498 = vector.shape_cast %497 : vector<9xf32> to vector<9x1xf32>
      %c0_278 = arith.constant 0 : index
      %c0_279 = arith.constant 0 : index
      %c0_280 = arith.constant 0 : index
      %499 = vector.load %arg9[%c0_278, %c0_279, %c0_280] : memref<1x9x1xf32, #tpu.memory_space<vmem>>, vector<1x9x1xf32>
      %500 = vector.shape_cast %499 : vector<1x9x1xf32> to vector<9x1xf32>
      %501 = vector.shape_cast %498 : vector<9x1xf32> to vector<1x9x1xf32>
      tpu.vector_store %arg9[%c0_278, %c0_279, %c0_280], %501 {strides = array<i32>} : memref<1x9x1xf32, #tpu.memory_space<vmem>>, vector<1x9x1xf32>,
      %c0_281 = arith.constant 0 : index
      %c0_282 = arith.constant 0 : index
      %502 = vector.load %arg14[%c0_281, %c0_282] : memref<1x128xf32, #tpu.memory_space<vmem>>, vector<1x128xf32>
      %cst_283 = arith.constant dense<0.000000e+00> : vector<1xf32>
      %503 = vector.multi_reduction <add>, %502, %cst_283 [1] : vector<1x128xf32> to vector<1xf32>
      %504 = vector.shape_cast %503 : vector<1xf32> to vector<1x1xf32>
      %c0_284 = arith.constant 0 : index
      %c0_285 = arith.constant 0 : index
      %c0_286 = arith.constant 0 : index
      %505 = vector.load %arg10[%c0_284, %c0_285, %c0_286] : memref<1x1x1xf32, #tpu.memory_space<vmem>>, vector<1x1x1xf32>
      %506 = vector.shape_cast %505 : vector<1x1x1xf32> to vector<1x1xf32>
      %507 = vector.shape_cast %504 : vector<1x1xf32> to vector<1x1x1xf32>
      tpu.vector_store %arg10[%c0_284, %c0_285, %c0_286], %507 {strides = array<i32>} : memref<1x1x1xf32, #tpu.memory_space<vmem>>, vector<1x1x1xf32>,
    } else {
    }
    return
  }
  func.func @transform_0(%arg0: i32, %arg1: i32) -> (i32, i32, i32, i32) {
    %c0_i32 = arith.constant 0 : i32
    %c0_i32_0 = arith.constant 0 : i32
    %c0_i32_1 = arith.constant 0 : i32
    return %arg0, %c0_i32, %arg1, %c0_i32_0 : i32, i32, i32, i32
  }
  func.func @transform_1(%arg0: i32, %arg1: i32) -> (i32, i32) {
    %c0_i32 = arith.constant 0 : i32
    %c0_i32_0 = arith.constant 0 : i32
    %c0_i32_1 = arith.constant 0 : i32
    return %c0_i32, %c0_i32_0 : i32, i32
  }
  func.func @transform_2(%arg0: i32, %arg1: i32) -> i32 {
    %c0_i32 = arith.constant 0 : i32
    %c0_i32_0 = arith.constant 0 : i32
    return %c0_i32 : i32
  }
  func.func @transform_3(%arg0: i32, %arg1: i32) -> (i32, i32, i32) {
    %c0_i32 = arith.constant 0 : i32
    %c0_i32_0 = arith.constant 0 : i32
    return %arg0, %arg1, %c0_i32 : i32, i32, i32
  }
  func.func @transform_4(%arg0: i32, %arg1: i32) -> (i32, i32, i32, i32) {
    %c0_i32 = arith.constant 0 : i32
    %c0_i32_0 = arith.constant 0 : i32
    %c0_i32_1 = arith.constant 0 : i32
    return %arg0, %c0_i32, %arg1, %c0_i32_0 : i32, i32, i32, i32
  }
  func.func @transform_5(%arg0: i32, %arg1: i32) -> (i32, i32, i32) {
    %c0_i32 = arith.constant 0 : i32
    %c0_i32_0 = arith.constant 0 : i32
    %c0_i32_1 = arith.constant 0 : i32
    return %arg0, %c0_i32, %c0_i32_0 : i32, i32, i32
  }
  func.func @transform_6(%arg0: i32, %arg1: i32) -> (i32, i32, i32) {
    %c0_i32 = arith.constant 0 : i32
    %c0_i32_0 = arith.constant 0 : i32
    %c0_i32_1 = arith.constant 0 : i32
    return %arg0, %c0_i32, %c0_i32_0 : i32, i32, i32
  }
  func.func @transform_7(%arg0: i32, %arg1: i32) -> (i32, i32, i32) {
    %c0_i32 = arith.constant 0 : i32
    %c0_i32_0 = arith.constant 0 : i32
    %c0_i32_1 = arith.constant 0 : i32
    return %arg0, %c0_i32, %c0_i32_0 : i32, i32, i32
  }
  func.func @transform_8(%arg0: i32, %arg1: i32) -> (i32, i32, i32) {
    %c0_i32 = arith.constant 0 : i32
    %c0_i32_0 = arith.constant 0 : i32
    %c0_i32_1 = arith.constant 0 : i32
    return %arg0, %c0_i32, %c0_i32_0 : i32, i32, i32
  }
}

</mosaic_0001>

<llo_original>
// kernel: tpu_custom_call.1
$region0: #{tpu_custom_call.1}
  #allocation0 [shape = 'u32[]', space=smem, size = 0x4, offset = 0x4, fixed_abs, tag = 'smem constant byte address 0x4 - core index']
  #allocation1 [shape = 'u32[72,128]{1,0:T(1,128)}', space=vmem, size = 0x9000, scoped, tag = 'internal scratch']
  #allocation2 [shape = 'f32[9,128]{1,0:T(8,128)}', space=vmem, size = 0x2000, scoped, tag = 'scratch operand']
  #allocation3 [shape = 'f32[9,128]{1,0:T(8,128)}', space=vmem, size = 0x2000, scoped, tag = 'scratch operand']
  #allocation4 [shape = 'f32[9,128]{1,0:T(8,128)}', space=vmem, size = 0x2000, scoped, tag = 'scratch operand']
  #allocation5 [shape = 'f32[1,128]{1,0:T(1,128)}', space=vmem, size = 0x200, scoped, tag = 'scratch operand']
  %s0 = inlined_call_operand.vmem [shape: f32[2,4,2,128], index: 0, kind: input, shape index: {}]
  %s1 = inlined_call_operand.vmem [shape: f32[9,4], index: 1, kind: input, shape index: {}]
  %s2 = inlined_call_operand.vmem [shape: f32[9], index: 2, kind: input, shape index: {}]
  %s3 = inlined_call_operand.vmem [shape: s32[2,2,128], index: 3, kind: input, shape index: {}]
  %s4 = inlined_call_operand.hbm [shape: f32[2,9,2,128], index: 4, kind: output, shape index: {0}]
  %s5 = inlined_call_operand.vmem [shape: f32[2,9,1], index: 5, kind: output, shape index: {1}]
  %s6 = inlined_call_operand.vmem [shape: f32[2,9,1], index: 6, kind: output, shape index: {2}]
  %s7 = inlined_call_operand.vmem [shape: f32[2,9,1], index: 7, kind: output, shape index: {3}]
  %s8 = inlined_call_operand.vmem [shape: f32[2,1,1], index: 8, kind: output, shape index: {4}]
  %9 = xla_tuple %s4, %s5, %s6, %s7, %s8
  %s10 = sld [smem:[#allocation0]]
  $region97: #{tpu_custom_call.1} parent=0
    _
  %s12 = ssub.s32 1, %s10
  %s13 = scalar_select 0, %s12, %s10
  $region1: #{tpu_custom_call.1} parent=0
    #allocation6 [shape = 'u8[8192]{0}', space=smem, size = 0x2000, scoped, tag = 'input window, operand 1, single buffered']
    #allocation7 [shape = 's32[2]{0}', space=sflag, size = 0x8, scoped, tag = 'scoped memory for tpu_custom_call.1']
    #allocation8 [shape = 's32[2]{0}', space=sflag, size = 0x8, scoped, tag = 'scoped memory for tpu_custom_call.1']
    #allocation9 [shape = 'u8[512]{0}', space=smem, size = 0x200, scoped, tag = 'input window, operand 2, single buffered']
    #allocation10 [shape = 's32[1]{0}', space=sflag, size = 0x4, scoped, tag = 'scoped memory for tpu_custom_call.1']
    #allocation11 [shape = 'u8[18432]{0}', space=vmem, size = 0x4800, scoped, tag = 'output window, operand 0']
    %14 = vsyncpa [#allocation8], 0
    %15 = vsyncpa [#allocation10], 0
    %16 = vsyncpa [#allocation7], 0
    %s17 = scalar_lea.sflag [#allocation7], 1
    %18 = vsyncpa %s17, 0
    loop: start=0, step=1, limit=4
    $region2: #{tpu_custom_call.1} parent=1 // loop_pre_header
      _
    $region3: #{tpu_custom_call.1} parent=1 // loop_header
      %s20 = sphi 0, %s24
      %p21 = scmp.ge.s32.totalorder %s20, 4
      %s27 = sphi 0, %s39
      %s28 = sphi 0, %s35
      %s29 = sphi 0, %s27
      %s30 = sphi 0, %s28
      %s31 = sphi 0, %s29
      %s32 = sphi 0, %s30
      %s44 = sphi 0, %s46
      %s47 = sphi 0, %s44
      %s48 = sphi 0, %s47
      %s64 = sphi 0, %s48
      %s68 = sphi 0, %s68
      %s70 = sphi 0, %s68
      %s71 = sphi 0, %s70
      %s85 = sphi 0, %s71
      %s89 = sphi 0, %s89
      %s91 = sphi 0, %s89
      %s92 = sphi 0, %s91
      %s106 = sphi 0, %s92
      %s114 = sphi 0, %s116
      %s117 = sphi 0, %s114
      %s118 = sphi 0, %s117
      %s134 = sphi 0, %s118
      %s142 = sphi 0, %s144
      %s145 = sphi 0, %s142
      %s146 = sphi 0, %s145
      %s162 = sphi 0, %s146
      %s168 = sphi 0, %s170
      %s171 = sphi 0, %s168
      %s172 = sphi 0, %s171
      %s188 = sphi 0, %s172
      %s194 = sphi 0, %s196
      %s197 = sphi 0, %s194
      %s198 = sphi 0, %s197
      %s214 = sphi 0, %s198
      %s220 = sphi 0, %s222
      %s223 = sphi 0, %s220
      %s224 = sphi 0, %s223
      %s240 = sphi 0, %s224
      %s246 = sphi 0, %s248
      %s249 = sphi 0, %s246
      %s250 = sphi 0, %s249
      %s266 = sphi 0, %s250
    $region4: #{tpu_custom_call.1} parent=1 // loop_header_branch
      %23 = sbr.rel (%p21) target = $region8
    $region5: #{tpu_custom_call.1} parent=1 // loop_body
      %s25 = ssub.s32 %s20, 1
      %s26 = ssub.s32 %s20, 2
      %s33 = sadd.s32 1, %s28
      %p34 = scmp.ge.s32.totalorder %s33, 1
      %s35 = scalar_select %p34, 0, %s33
      %s36 = sadd.s32 1, %s27
      %s37 = scalar_select %p34, %s36, %s27
      %p38 = scmp.ge.s32.totalorder %s37, 2
      %s39 = scalar_select %p38, 0, %s37
      %s40 = ssub.s32 %s27, %s39
      %s41 = ssub.s32 %s28, %s35
      %s42 = sor.u32 %s40, %s41
      %p43 = scmp.eq.s32.totalorder %s42, 0
      %s45 = sadd.s32 %s44, 1
      %s46 = scalar_select %p43, %s44, %s45
      %p49 = pneg %p43
      %p50 = scmp.eq.s32.totalorder %s20, 1
      %p51 = por %p49, %p50
      %p52 = scmp.ne.s32.totalorder %s44, %s47
      %p53 = scmp.eq.s32.totalorder %s20, 0
      %p54 = por %p52, %p53
      %p55 = scmp.ne.s32.totalorder %s44, %s47
      %p56 = scmp.eq.s32.totalorder %s25, 1
      %p57 = por %p55, %p56
      %p58 = scmp.ne.s32.totalorder %s47, %s48
      %p59 = scmp.eq.s32.totalorder %s25, 0
      %p60 = por %p58, %p59
      %p61 = scmp.ne.s32.totalorder %s47, %s48
      %p62 = scmp.eq.s32.totalorder %s26, 1
      %p63 = por %p61, %p62
      %p65 = scmp.ne.s32.totalorder %s48, %s64
      %p66 = scmp.eq.s32.totalorder %s26, 0
      %p67 = por %p65, %p66
      %s69 = sadd.s32 %s68, 1
      %p72 = scmp.eq.s32.totalorder %s20, 1
      %p73 = scmp.ne.s32.totalorder %s68, %s70
      %p74 = scmp.eq.s32.totalorder %s20, 0
      %p75 = por %p73, %p74
      %p76 = scmp.ne.s32.totalorder %s68, %s70
      %p77 = scmp.eq.s32.totalorder %s25, 1
      %p78 = por %p76, %p77
      %p79 = scmp.ne.s32.totalorder %s70, %s71
      %p80 = scmp.eq.s32.totalorder %s25, 0
      %p81 = por %p79, %p80
      %p82 = scmp.ne.s32.totalorder %s70, %s71
      %p83 = scmp.eq.s32.totalorder %s26, 1
      %p84 = por %p82, %p83
      %p86 = scmp.ne.s32.totalorder %s71, %s85
      %p87 = scmp.eq.s32.totalorder %s26, 0
      %p88 = por %p86, %p87
      %s90 = sadd.s32 %s89, 1
      %p93 = scmp.eq.s32.totalorder %s20, 1
      %p94 = scmp.ne.s32.totalorder %s89, %s91
      %p95 = scmp.eq.s32.totalorder %s20, 0
      %p96 = por %p94, %p95
      %p97 = scmp.ne.s32.totalorder %s89, %s91
      %p98 = scmp.eq.s32.totalorder %s25, 1
      %p99 = por %p97, %p98
      %p100 = scmp.ne.s32.totalorder %s91, %s92
      %p101 = scmp.eq.s32.totalorder %s25, 0
      %p102 = por %p100, %p101
      %p103 = scmp.ne.s32.totalorder %s91, %s92
      %p104 = scmp.eq.s32.totalorder %s26, 1
      %p105 = por %p103, %p104
      %p107 = scmp.ne.s32.totalorder %s92, %s106
      %p108 = scmp.eq.s32.totalorder %s26, 0
      %p109 = por %p107, %p108
      %s110 = ssub.s32 %s27, %s39
      %s111 = ssub.s32 %s28, %s35
      %s112 = sor.u32 %s110, %s111
      %p113 = scmp.eq.s32.totalorder %s112, 0
      %s115 = sadd.s32 %s114, 1
      %s116 = scalar_select %p113, %s114, %s115
      %p119 = pneg %p113
      %p120 = scmp.eq.s32.totalorder %s20, 1
      %p121 = por %p119, %p120
      %p122 = scmp.ne.s32.totalorder %s114, %s117
      %p123 = scmp.eq.s32.totalorder %s20, 0
      %p124 = por %p122, %p123
      %p125 = scmp.ne.s32.totalorder %s114, %s117
      %p126 = scmp.eq.s32.totalorder %s25, 1
      %p127 = por %p125, %p126
      %p128 = scmp.ne.s32.totalorder %s117, %s118
      %p129 = scmp.eq.s32.totalorder %s25, 0
      %p130 = por %p128, %p129
      %p131 = scmp.ne.s32.totalorder %s117, %s118
      %p132 = scmp.eq.s32.totalorder %s26, 1
      %p133 = por %p131, %p132
      %p135 = scmp.ne.s32.totalorder %s118, %s134
      %p136 = scmp.eq.s32.totalorder %s26, 0
      %p137 = por %p135, %p136
      %s138 = ssub.s32 %s27, %s39
      %s139 = ssub.s32 %s28, %s35
      %s140 = sor.u32 %s138, %s139
      %p141 = scmp.eq.s32.totalorder %s140, 0
      %s143 = sadd.s32 %s142, 1
      %s144 = scalar_select %p141, %s142, %s143
      %p147 = pneg %p141
      %p148 = scmp.eq.s32.totalorder %s20, 1
      %p149 = por %p147, %p148
      %p150 = scmp.ne.s32.totalorder %s142, %s145
      %p151 = scmp.eq.s32.totalorder %s20, 0
      %p152 = por %p150, %p151
      %p153 = scmp.ne.s32.totalorder %s142, %s145
      %p154 = scmp.eq.s32.totalorder %s25, 1
      %p155 = por %p153, %p154
      %p156 = scmp.ne.s32.totalorder %s145, %s146
      %p157 = scmp.eq.s32.totalorder %s25, 0
      %p158 = por %p156, %p157
      %p159 = scmp.ne.s32.totalorder %s145, %s146
      %p160 = scmp.eq.s32.totalorder %s26, 1
      %p161 = por %p159, %p160
      %p163 = scmp.ne.s32.totalorder %s146, %s162
      %p164 = scmp.eq.s32.totalorder %s26, 0
      %p165 = por %p163, %p164
      %s166 = ssub.s32 %s27, %s39
      %p167 = scmp.eq.s32.totalorder %s166, 0
      %s169 = sadd.s32 %s168, 1
      %s170 = scalar_select %p167, %s168, %s169
      %p173 = pneg %p167
      %p174 = scmp.eq.s32.totalorder %s20, 1
      %p175 = por %p173, %p174
      %p176 = scmp.ne.s32.totalorder %s168, %s171
      %p177 = scmp.eq.s32.totalorder %s20, 0
      %p178 = por %p176, %p177
      %p179 = scmp.ne.s32.totalorder %s168, %s171
      %p180 = scmp.eq.s32.totalorder %s25, 1
      %p181 = por %p179, %p180
      %p182 = scmp.ne.s32.totalorder %s171, %s172
      %p183 = scmp.eq.s32.totalorder %s25, 0
      %p184 = por %p182, %p183
      %p185 = scmp.ne.s32.totalorder %s171, %s172
      %p186 = scmp.eq.s32.totalorder %s26, 1
      %p187 = por %p185, %p186
      %p189 = scmp.ne.s32.totalorder %s172, %s188
      %p190 = scmp.eq.s32.totalorder %s26, 0
      %p191 = por %p189, %p190
      %s192 = ssub.s32 %s27, %s39
      %p193 = scmp.eq.s32.totalorder %s192, 0
      %s195 = sadd.s32 %s194, 1
      %s196 = scalar_select %p193, %s194, %s195
      %p199 = pneg %p193
      %p200 = scmp.eq.s32.totalorder %s20, 1
      %p201 = por %p199, %p200
      %p202 = scmp.ne.s32.totalorder %s194, %s197
      %p203 = scmp.eq.s32.totalorder %s20, 0
      %p204 = por %p202, %p203
      %p205 = scmp.ne.s32.totalorder %s194, %s197
      %p206 = scmp.eq.s32.totalorder %s25, 1
      %p207 = por %p205, %p206
      %p208 = scmp.ne.s32.totalorder %s197, %s198
      %p209 = scmp.eq.s32.totalorder %s25, 0
      %p210 = por %p208, %p209
      %p211 = scmp.ne.s32.totalorder %s197, %s198
      %p212 = scmp.eq.s32.totalorder %s26, 1
      %p213 = por %p211, %p212
      %p215 = scmp.ne.s32.totalorder %s198, %s214
      %p216 = scmp.eq.s32.totalorder %s26, 0
      %p217 = por %p215, %p216
      %s218 = ssub.s32 %s27, %s39
      %p219 = scmp.eq.s32.totalorder %s218, 0
      %s221 = sadd.s32 %s220, 1
      %s222 = scalar_select %p219, %s220, %s221
      %p225 = pneg %p219
      %p226 = scmp.eq.s32.totalorder %s20, 1
      %p227 = por %p225, %p226
      %p228 = scmp.ne.s32.totalorder %s220, %s223
      %p229 = scmp.eq.s32.totalorder %s20, 0
      %p230 = por %p228, %p229
      %p231 = scmp.ne.s32.totalorder %s220, %s223
      %p232 = scmp.eq.s32.totalorder %s25, 1
      %p233 = por %p231, %p232
      %p234 = scmp.ne.s32.totalorder %s223, %s224
      %p235 = scmp.eq.s32.totalorder %s25, 0
      %p236 = por %p234, %p235
      %p237 = scmp.ne.s32.totalorder %s223, %s224
      %p238 = scmp.eq.s32.totalorder %s26, 1
      %p239 = por %p237, %p238
      %p241 = scmp.ne.s32.totalorder %s224, %s240
      %p242 = scmp.eq.s32.totalorder %s26, 0
      %p243 = por %p241, %p242
      %s244 = ssub.s32 %s27, %s39
      %p245 = scmp.eq.s32.totalorder %s244, 0
      %s247 = sadd.s32 %s246, 1
      %s248 = scalar_select %p245, %s246, %s247
      %p251 = pneg %p245
      %p252 = scmp.eq.s32.totalorder %s20, 1
      %p253 = por %p251, %p252
      %p254 = scmp.ne.s32.totalorder %s246, %s249
      %p255 = scmp.eq.s32.totalorder %s20, 0
      %p256 = por %p254, %p255
      %p257 = scmp.ne.s32.totalorder %s246, %s249
      %p258 = scmp.eq.s32.totalorder %s25, 1
      %p259 = por %p257, %p258
      %p260 = scmp.ne.s32.totalorder %s249, %s250
      %p261 = scmp.eq.s32.totalorder %s25, 0
      %p262 = por %p260, %p261
      %p263 = scmp.ne.s32.totalorder %s249, %s250
      %p264 = scmp.eq.s32.totalorder %s26, 1
      %p265 = por %p263, %p264
      %p267 = scmp.ne.s32.totalorder %s250, %s266
      %p268 = scmp.eq.s32.totalorder %s26, 0
      %p269 = por %p267, %p268
      %p270 = scmp.le.s32.totalorder 1, %s20
      %p271 = scmp.lt.s32.totalorder %s20, 3
      %p272 = pnand %p270, %p271
      %p273 = pneg %p272
      // Predicated region
      $region9: #{tpu_custom_call.1} parent=5 // pred_check
        _
      $region10: #{tpu_custom_call.1} parent=5 // pred_check_branch
        %275 = sbr.rel (%p272) target = $region12
      $region11: #{tpu_custom_call.1} parent=5 // pred_region
        %s276 = ssub.s32 %s20, 1
        // Predicated region
        $region13: #{tpu_custom_call.1} parent=11 // pred_check
          %p277 = pneg %p81
        $region14: #{tpu_custom_call.1} parent=11 // pred_check_branch
          %279 = sbr.rel (%p277) target = $region16
        $region15: #{tpu_custom_call.1} parent=11 // pred_region
          %281 = vsyncadd [#allocation8], 0
          %s282 = sshll.u32 %s1, 4
          %s283 = int_to_ptr.vmem [resolvable:$true] %s282
          %288 = dma.vmem_to_smem %s283, 256, [#allocation6], [#allocation8], 128, 128, 8
        $region16: #{tpu_custom_call.1} parent=11 // pred_fallthru
          _
        // Predicated region
        $region17: #{tpu_custom_call.1} parent=11 // pred_check
          %p289 = pneg %p102
        $region18: #{tpu_custom_call.1} parent=11 // pred_check_branch
          %291 = sbr.rel (%p289) target = $region20
        $region19: #{tpu_custom_call.1} parent=11 // pred_region
          %293 = vsyncadd [#allocation10], 0
          %s295 = sshll.u32 %s2, 4
          %s296 = int_to_ptr.vmem [resolvable:$true] %s295
          %298 = dma.vmem_to_smem %s296, 16, [#allocation9], [#allocation10]
        $region20: #{tpu_custom_call.1} parent=11 // pred_fallthru
          _
      $region12: #{tpu_custom_call.1} parent=5 // pred_fallthru
        _
      %p299 = scmp.lt.s32.totalorder %s20, 2
      // Predicated region
      $region21: #{tpu_custom_call.1} parent=5 // pred_check
        %p300 = pneg %p299
      $region22: #{tpu_custom_call.1} parent=5 // pred_check_branch
        %302 = sbr.rel (%p300) target = $region24
      $region23: #{tpu_custom_call.1} parent=5 // pred_region
        // Predicated region
        $region25: #{tpu_custom_call.1} parent=23 // pred_check
          %p303 = pneg %p54
        $region26: #{tpu_custom_call.1} parent=23 // pred_check_branch
          %305 = sbr.rel (%p303) target = $region28
        $region27: #{tpu_custom_call.1} parent=23 // pred_region
          %p306 = scmp.lt.s32.totalorder %s27, 1
          %s307 = scalar_select %p306, %s27, 1
          %p308 = scmp.lt.s32.totalorder %s28, 0
          %s309 = scalar_select %p308, %s28, 0
          %s310 = smul.addr %s307, 4
          %s311 = sadd.s32 %s309, %s310
          %s312 = smul.addr %s311, 2
          %s313 = scalar_lea.vmem %s0, %s312
        $region28: #{tpu_custom_call.1} parent=23 // pred_fallthru
          _
        // Predicated region
        $region29: #{tpu_custom_call.1} parent=23 // pred_check
          %p314 = pneg %p124
        $region30: #{tpu_custom_call.1} parent=23 // pred_check_branch
          %316 = sbr.rel (%p314) target = $region32
        $region31: #{tpu_custom_call.1} parent=23 // pred_region
          %p317 = scmp.lt.s32.totalorder %s27, 1
          %s318 = scalar_select %p317, %s27, 1
          %p319 = scmp.lt.s32.totalorder %s28, 0
          %s320 = scalar_select %p319, %s28, 0
          %s321 = sadd.s32 %s320, %s318
          %s322 = smul.addr %s321, 2
          %s323 = scalar_lea.vmem %s3, %s322
        $region32: #{tpu_custom_call.1} parent=23 // pred_fallthru
          _
      $region24: #{tpu_custom_call.1} parent=5 // pred_fallthru
        _
      %p324 = scmp.le.s32.totalorder 1, %s20
      %p325 = scmp.lt.s32.totalorder %s20, 3
      %p326 = pnand %p324, %p325
      %p327 = pneg %p326
      // Predicated region
      $region33: #{tpu_custom_call.1} parent=5 // pred_check
        _
      $region34: #{tpu_custom_call.1} parent=5 // pred_check_branch
        %329 = sbr.rel (%p326) target = $region36
      $region35: #{tpu_custom_call.1} parent=5 // pred_region
        %s330 = ssub.s32 %s20, 1
        // Predicated region
        $region37: #{tpu_custom_call.1} parent=35 // pred_check
          %p331 = pneg %p81
        $region38: #{tpu_custom_call.1} parent=35 // pred_check_branch
          %333 = sbr.rel (%p331) target = $region40
        $region39: #{tpu_custom_call.1} parent=35 // pred_region
          %335 = dma.done [#allocation8], 256
        $region40: #{tpu_custom_call.1} parent=35 // pred_fallthru
          _
        // Predicated region
        $region41: #{tpu_custom_call.1} parent=35 // pred_check
          %p336 = pneg %p102
        $region42: #{tpu_custom_call.1} parent=35 // pred_check_branch
          %338 = sbr.rel (%p336) target = $region44
        $region43: #{tpu_custom_call.1} parent=35 // pred_region
          %340 = dma.done [#allocation10], 16
        $region44: #{tpu_custom_call.1} parent=35 // pred_fallthru
          _
        %341 = sfence
        %p342 = scmp.lt.s32.totalorder %s29, 1
        %s343 = scalar_select %p342, %s29, 1
        %p344 = scmp.lt.s32.totalorder %s30, 0
        %s345 = scalar_select %p344, %s30, 0
        %s346 = smul.addr %s343, 4
        %s347 = sadd.s32 %s345, %s346
        %s348 = smul.addr %s347, 2
        %s349 = scalar_lea.vmem %s0, %s348
        %p350 = pneg %p60
        %p351 = pneg %p57
        %p352 = pneg %p81
        %p353 = pneg %p78
        %p354 = pneg %p102
        %p355 = pneg %p99
        %p356 = scmp.lt.s32.totalorder %s29, 1
        %s357 = scalar_select %p356, %s29, 1
        %p358 = scmp.lt.s32.totalorder %s30, 0
        %s359 = scalar_select %p358, %s30, 0
        %s360 = sadd.s32 %s359, %s357
        %s361 = smul.addr %s360, 2
        %s362 = scalar_lea.vmem %s3, %s361
        %p363 = pneg %p130
        %p364 = pneg %p127
        %p365 = pneg %p158
        %p366 = pneg %p155
        %s367 = sand.u32 %s145, 1
        %s368 = scalar_lea.sflag [#allocation7], %s367
        %s369 = sand.u32 %s145, 1
        %s370 = smul.addr %s369, 18
        %s371 = scalar_lea.vmem [#allocation11], %s370
        %p372 = pneg %p184
        %p373 = pneg %p181
        %p374 = scmp.lt.s32.totalorder %s29, 1
        %s375 = scalar_select %p374, %s29, 1
        %s376 = smul.addr %s375, 2
        %s377 = smul.addr %s376, 8
        %s378 = scalar_lea.vmem %s5, %s377
        %p379 = pneg %p210
        %p380 = pneg %p207
        %p381 = scmp.lt.s32.totalorder %s29, 1
        %s382 = scalar_select %p381, %s29, 1
        %s383 = smul.addr %s382, 2
        %s384 = smul.addr %s383, 8
        %s385 = scalar_lea.vmem %s6, %s384
        %p386 = pneg %p236
        %p387 = pneg %p233
        %p388 = scmp.lt.s32.totalorder %s29, 1
        %s389 = scalar_select %p388, %s29, 1
        %s390 = smul.addr %s389, 2
        %s391 = smul.addr %s390, 8
        %s392 = scalar_lea.vmem %s7, %s391
        %p393 = pneg %p262
        %p394 = pneg %p259
        %p395 = scmp.lt.s32.totalorder %s29, 1
        %s396 = scalar_select %p395, %s29, 1
        %s397 = scalar_lea.vmem %s8, %s396
        %p398 = scmp.lt.s32.totalorder %s29, 1
        %s399 = scalar_select %p398, %s29, 1
        %p400 = scmp.lt.s32.totalorder %s30, 0
        %s401 = scalar_select %p400, %s30, 0
        %s402 = smul.addr %s399, 4
        %s403 = sadd.s32 %s401, %s402
        %s404 = smul.addr %s403, 2
        %s405 = scalar_lea.vmem %s0, %s404
        %p406 = scmp.lt.s32.totalorder %s29, 1
        %s407 = scalar_select %p406, %s29, 1
        %p408 = scmp.lt.s32.totalorder %s30, 0
        %s409 = scalar_select %p408, %s30, 0
        %s410 = sadd.s32 %s409, %s407
        %s411 = smul.addr %s410, 2
        %s412 = scalar_lea.vmem %s3, %s411
        %p413 = scmp.lt.s32.totalorder %s29, 1
        %s414 = scalar_select %p413, %s29, 1
        %s415 = smul.addr %s414, 2
        %s416 = smul.addr %s415, 8
        %s417 = scalar_lea.vmem %s5, %s416
        %p418 = scmp.lt.s32.totalorder %s29, 1
        %s419 = scalar_select %p418, %s29, 1
        %s420 = smul.addr %s419, 2
        %s421 = smul.addr %s420, 8
        %s422 = scalar_lea.vmem %s6, %s421
        %p423 = scmp.lt.s32.totalorder %s29, 1
        %s424 = scalar_select %p423, %s29, 1
        %s425 = smul.addr %s424, 2
        %s426 = smul.addr %s425, 8
        %s427 = scalar_lea.vmem %s7, %s426
        %p428 = scmp.lt.s32.totalorder %s29, 1
        %s429 = scalar_select %p428, %s29, 1
        %s430 = scalar_lea.vmem %s8, %s429
        %p431 = scmp.eq.s32.totalorder %s30, 0
        // Predicated region
        $region45: #{tpu_custom_call.1} parent=35 // pred_check
          %p432 = pneg %p431
        $region46: #{tpu_custom_call.1} parent=35 // pred_check_branch
          %434 = sbr.rel (%p432) target = $region48
        $region47: #{tpu_custom_call.1} parent=35 // pred_region
          %435 = vst [vmem:[#allocation2] sm:$0xff] 0.0
          %436 = vst [vmem:[#allocation2 + $0x8] sm:$0x1] 0.0
          %437 = vst [vmem:[#allocation3] sm:$0xff] 0.0
          %438 = vst [vmem:[#allocation3 + $0x8] sm:$0x1] 0.0
          %439 = vst [vmem:[#allocation4] sm:$0xff] 0.0
          %440 = vst [vmem:[#allocation4 + $0x8] sm:$0x1] 0.0
          %441 = vst [vmem:[#allocation5] sm:$0x1] 0.0
        $region48: #{tpu_custom_call.1} parent=35 // pred_fallthru
          _
        %v442 = vld [vmem:[%s405] sm:$0x3]
        %s443 = sadd.s32 0, 2
        %s444 = scalar_lea.vmem %s405, %s443
        %v445 = vld [vmem:[%s444] sm:$0x3]
        %s446 = sadd.s32 0, 4
        %s447 = scalar_lea.vmem %s405, %s446
        %v448 = vld [vmem:[%s447] sm:$0x3]
        %s449 = sadd.s32 0, 6
        %s450 = scalar_lea.vmem %s405, %s449
        %v451 = vld [vmem:[%s450] sm:$0x3]
        %s452 = sld [smem:[#allocation6]]
        %v453 = vstv %s452
        %v454 = vmul.f32 %v442, %v453
        %s455 = sld [smem:[#allocation6 + $0x1]]
        %v456 = vstv %s455
        %v457 = vmul.f32 %v445, %v456
        %v458 = vadd.f32 %v454, %v457
        %s459 = sld [smem:[#allocation6 + $0x2]]
        %v460 = vstv %s459
        %v461 = vmul.f32 %v448, %v460
        %v462 = vadd.f32 %v458, %v461
        %s463 = sld [smem:[#allocation6 + $0x3]]
        %v464 = vstv %s463
        %v465 = vmul.f32 %v451, %v464
        %v466 = vadd.f32 %v462, %v465
        %s467 = sld [smem:[#allocation9]]
        %v468 = vstv %s467
        %v469 = vadd.f32 %v466, %v468
        %470 = vst [vmem:[%s371] sm:$0x3] %v469
        %s471 = sld [smem:[#allocation6 + $0x80]]
        %v472 = vstv %s471
        %v473 = vmul.f32 %v442, %v472
        %s474 = sld [smem:[#allocation6 + $0x81]]
        %v475 = vstv %s474
        %v476 = vmul.f32 %v445, %v475
        %v477 = vadd.f32 %v473, %v476
        %s478 = sld [smem:[#allocation6 + $0x82]]
        %v479 = vstv %s478
        %v480 = vmul.f32 %v448, %v479
        %v481 = vadd.f32 %v477, %v480
        %s482 = sld [smem:[#allocation6 + $0x83]]
        %v483 = vstv %s482
        %v484 = vmul.f32 %v451, %v483
        %v485 = vadd.f32 %v481, %v484
        %s486 = sld [smem:[#allocation9 + $0x1]]
        %v487 = vstv %s486
        %v488 = vadd.f32 %v485, %v487
        %s489 = scalar_lea.vmem %s371, %s443 [#allocation11]
        %490 = vst [vmem:[%s489] sm:$0x3] %v488
        %s491 = sld [smem:[#allocation6 + $0x100]]
        %v492 = vstv %s491
        %v493 = vmul.f32 %v442, %v492
        %s494 = sld [smem:[#allocation6 + $0x101]]
        %v495 = vstv %s494
        %v496 = vmul.f32 %v445, %v495
        %v497 = vadd.f32 %v493, %v496
        %s498 = sld [smem:[#allocation6 + $0x102]]
        %v499 = vstv %s498
        %v500 = vmul.f32 %v448, %v499
        %v501 = vadd.f32 %v497, %v500
        %s502 = sld [smem:[#allocation6 + $0x103]]
        %v503 = vstv %s502
        %v504 = vmul.f32 %v451, %v503
        %v505 = vadd.f32 %v501, %v504
        %s506 = sld [smem:[#allocation9 + $0x2]]
        %v507 = vstv %s506
        %v508 = vadd.f32 %v505, %v507
        %s509 = scalar_lea.vmem %s371, %s446 [#allocation11]
        %510 = vst [vmem:[%s509] sm:$0x3] %v508
        %s511 = sld [smem:[#allocation6 + $0x180]]
        %v512 = vstv %s511
        %v513 = vmul.f32 %v442, %v512
        %s514 = sld [smem:[#allocation6 + $0x181]]
        %v515 = vstv %s514
        %v516 = vmul.f32 %v445, %v515
        %v517 = vadd.f32 %v513, %v516
        %s518 = sld [smem:[#allocation6 + $0x182]]
        %v519 = vstv %s518
        %v520 = vmul.f32 %v448, %v519
        %v521 = vadd.f32 %v517, %v520
        %s522 = sld [smem:[#allocation6 + $0x183]]
        %v523 = vstv %s522
        %v524 = vmul.f32 %v451, %v523
        %v525 = vadd.f32 %v521, %v524
        %s526 = sld [smem:[#allocation9 + $0x3]]
        %v527 = vstv %s526
        %v528 = vadd.f32 %v525, %v527
        %s529 = scalar_lea.vmem %s371, %s449 [#allocation11]
        %530 = vst [vmem:[%s529] sm:$0x3] %v528
        %s531 = sld [smem:[#allocation6 + $0x200]]
        %v532 = vstv %s531
        %v533 = vmul.f32 %v442, %v532
        %s534 = sld [smem:[#allocation6 + $0x201]]
        %v535 = vstv %s534
        %v536 = vmul.f32 %v445, %v535
        %v537 = vadd.f32 %v533, %v536
        %s538 = sld [smem:[#allocation6 + $0x202]]
        %v539 = vstv %s538
        %v540 = vmul.f32 %v448, %v539
        %v541 = vadd.f32 %v537, %v540
        %s542 = sld [smem:[#allocation6 + $0x203]]
        %v543 = vstv %s542
        %v544 = vmul.f32 %v451, %v543
        %v545 = vadd.f32 %v541, %v544
        %s546 = sld [smem:[#allocation9 + $0x4]]
        %v547 = vstv %s546
        %v548 = vadd.f32 %v545, %v547
        %s549 = sadd.s32 0, 8
        %s550 = scalar_lea.vmem %s371, %s549 [#allocation11]
        %551 = vst [vmem:[%s550] sm:$0x3] %v548
        %s552 = sld [smem:[#allocation6 + $0x280]]
        %v553 = vstv %s552
        %v554 = vmul.f32 %v442, %v553
        %s555 = sld [smem:[#allocation6 + $0x281]]
        %v556 = vstv %s555
        %v557 = vmul.f32 %v445, %v556
        %v558 = vadd.f32 %v554, %v557
        %s559 = sld [smem:[#allocation6 + $0x282]]
        %v560 = vstv %s559
        %v561 = vmul.f32 %v448, %v560
        %v562 = vadd.f32 %v558, %v561
        %s563 = sld [smem:[#allocation6 + $0x283]]
        %v564 = vstv %s563
        %v565 = vmul.f32 %v451, %v564
        %v566 = vadd.f32 %v562, %v565
        %s567 = sld [smem:[#allocation9 + $0x5]]
        %v568 = vstv %s567
        %v569 = vadd.f32 %v566, %v568
        %s570 = sadd.s32 0, 10
        %s571 = scalar_lea.vmem %s371, %s570 [#allocation11]
        %572 = vst [vmem:[%s571] sm:$0x3] %v569
        %s573 = sld [smem:[#allocation6 + $0x300]]
        %v574 = vstv %s573
        %v575 = vmul.f32 %v442, %v574
        %s576 = sld [smem:[#allocation6 + $0x301]]
        %v577 = vstv %s576
        %v578 = vmul.f32 %v445, %v577
        %v579 = vadd.f32 %v575, %v578
        %s580 = sld [smem:[#allocation6 + $0x302]]
        %v581 = vstv %s580
        %v582 = vmul.f32 %v448, %v581
        %v583 = vadd.f32 %v579, %v582
        %s584 = sld [smem:[#allocation6 + $0x303]]
        %v585 = vstv %s584
        %v586 = vmul.f32 %v451, %v585
        %v587 = vadd.f32 %v583, %v586
        %s588 = sld [smem:[#allocation9 + $0x6]]
        %v589 = vstv %s588
        %v590 = vadd.f32 %v587, %v589
        %s591 = sadd.s32 0, 12
        %s592 = scalar_lea.vmem %s371, %s591 [#allocation11]
        %593 = vst [vmem:[%s592] sm:$0x3] %v590
        %s594 = sld [smem:[#allocation6 + $0x380]]
        %v595 = vstv %s594
        %v596 = vmul.f32 %v442, %v595
        %s597 = sld [smem:[#allocation6 + $0x381]]
        %v598 = vstv %s597
        %v599 = vmul.f32 %v445, %v598
        %v600 = vadd.f32 %v596, %v599
        %s601 = sld [smem:[#allocation6 + $0x382]]
        %v602 = vstv %s601
        %v603 = vmul.f32 %v448, %v602
        %v604 = vadd.f32 %v600, %v603
        %s605 = sld [smem:[#allocation6 + $0x383]]
        %v606 = vstv %s605
        %v607 = vmul.f32 %v451, %v606
        %v608 = vadd.f32 %v604, %v607
        %s609 = sld [smem:[#allocation9 + $0x7]]
        %v610 = vstv %s609
        %v611 = vadd.f32 %v608, %v610
        %s612 = sadd.s32 0, 14
        %s613 = scalar_lea.vmem %s371, %s612 [#allocation11]
        %614 = vst [vmem:[%s613] sm:$0x3] %v611
        %s615 = sld [smem:[#allocation6 + $0x400]]
        %v616 = vstv %s615
        %v617 = vmul.f32 %v442, %v616
        %s618 = sld [smem:[#allocation6 + $0x401]]
        %v619 = vstv %s618
        %v620 = vmul.f32 %v445, %v619
        %v621 = vadd.f32 %v617, %v620
        %s622 = sld [smem:[#allocation6 + $0x402]]
        %v623 = vstv %s622
        %v624 = vmul.f32 %v448, %v623
        %v625 = vadd.f32 %v621, %v624
        %s626 = sld [smem:[#allocation6 + $0x403]]
        %v627 = vstv %s626
        %v628 = vmul.f32 %v451, %v627
        %v629 = vadd.f32 %v625, %v628
        %s630 = sld [smem:[#allocation9 + $0x8]]
        %v631 = vstv %s630
        %v632 = vadd.f32 %v629, %v631
        %s633 = sadd.s32 0, 16
        %s634 = scalar_lea.vmem %s371, %s633 [#allocation11]
        %635 = vst [vmem:[%s634] sm:$0x3] %v632
        %v636 = vld [vmem:[%s412] sm:$0x3]
        %v637 = vmax.f32 %v469, %v488
        %v638 = vmax.f32 %v637, %v508
        %v639 = vmax.f32 %v638, %v528
        %v640 = vmax.f32 %v639, %v548
        %v641 = vmax.f32 %v640, %v569
        %v642 = vmax.f32 %v641, %v590
        %v643 = vmax.f32 %v642, %v611
        %v644 = vmax.f32 %v643, %v632
        %v645 = vsub.f32 %v469, %v644
        %v646 = vmul.f32 %v645, 1.442695
        %v647 = vpow.pop %v646
        %v648 = vsub.f32 %v488, %v644
        %v649 = vmul.f32 %v648, 1.442695
        %v650 = vpow.pop %v649
        %v651 = vsub.f32 %v508, %v644
        %v652 = vmul.f32 %v651, 1.442695
        %v653 = vpow.pop %v652
        %v654 = vsub.f32 %v528, %v644
        %v655 = vmul.f32 %v654, 1.442695
        %v656 = vpow.pop %v655
        %v657 = vsub.f32 %v548, %v644
        %v658 = vmul.f32 %v657, 1.442695
        %v659 = vpow.pop %v658
        %v660 = vsub.f32 %v569, %v644
        %v661 = vmul.f32 %v660, 1.442695
        %v662 = vpow.pop %v661
        %v663 = vsub.f32 %v590, %v644
        %v664 = vmul.f32 %v663, 1.442695
        %v665 = vpow.pop %v664
        %v666 = vsub.f32 %v611, %v644
        %v667 = vmul.f32 %v666, 1.442695
        %v668 = vpow.pop %v667
        %v669 = vsub.f32 %v632, %v644
        %v670 = vmul.f32 %v669, 1.442695
        %v671 = vpow.pop %v670
        %v672 = vadd.f32 %v647, %v650
        %v673 = vadd.f32 %v672, %v653
        %v674 = vadd.f32 %v673, %v656
        %v675 = vadd.f32 %v674, %v659
        %v676 = vadd.f32 %v675, %v662
        %v677 = vadd.f32 %v676, %v665
        %v678 = vadd.f32 %v677, %v668
        %v679 = vadd.f32 %v678, %v671
        %v680 = vrcp.pop %v679
        %v681 = vmul.f32 %v679, %v680
        %v682 = vsub.f32 1.0, %v681
        %v683 = vmul.f32 %v680, %v682
        %v684 = vadd.f32 %v680, %v683
        %vm685 = vweird.f32 %v679
        %vm686 = vweird.f32 %v680
        %vm687 = vmor %vm685, %vm686
        %v688 = vsel %vm687, %v680, %v684
        %v689 = vand.u32 2147483647, %v679
        %vm690 = vcmp.eq.f32.partialorder %v689, 8.507059e+37
        %v691 = vand.u32 %v679, 2147483648
        %v692 = vor.u32 1.1754944e-38, %v691
        %v693 = vsel %vm690, %v692, %v688
        %v694 = vmul.f32 1.0, %v693
        %v695 = vlog2.pop %v679
        %v696 = vmul.f32 %v695, 0.6931472
        %v697 = vadd.f32 %v644, %v696
        %v698 = vmul.f32 %v647, %v694
        %vm699 = vcmp.eq.s32.totalorder %v636, 0
        %v700 = vsel %vm699, 1, 0
        %v701 = vcvt.s32.f32 %v700
        %v702 = vmul.f32 %v698, %v698
        %v703 = vld [vmem:[#allocation2] sm:$0x1]
        %v704 = vmul.f32 %v698, %v701
        %vm705 = vcmask 1041408
        %v706 = vsel %vm705, %v704, 0.0
        %v707 = vrot.slane %v706, 4
        %v708 = vadd.f32 %v706, %v707
        %v709 = vrot.slane %v708, 2
        %v710 = vadd.f32 %v708, %v709
        %v711 = vrot.slane %v710, 1
        %v712 = vadd.f32 %v710, %v711
        %v713 = vadd.f32 %v703, %v712
        %714 = vst [vmem:[#allocation2] sm:$0x1] %v713
        %v715 = vld [vmem:[#allocation3] sm:$0x1]
        %v716 = vsel %vm705, %v702, 0.0
        %v717 = vrot.slane %v716, 4
        %v718 = vadd.f32 %v716, %v717
        %v719 = vrot.slane %v718, 2
        %v720 = vadd.f32 %v718, %v719
        %v721 = vrot.slane %v720, 1
        %v722 = vadd.f32 %v720, %v721
        %v723 = vadd.f32 %v715, %v722
        %724 = vst [vmem:[#allocation3] sm:$0x1] %v723
        %v725 = vld [vmem:[#allocation4] sm:$0x1]
        %v726 = vsel %vm705, %v701, 0.0
        %v727 = vrot.slane %v726, 4
        %v728 = vadd.f32 %v726, %v727
        %v729 = vrot.slane %v728, 2
        %v730 = vadd.f32 %v728, %v729
        %v731 = vrot.slane %v730, 1
        %v732 = vadd.f32 %v730, %v731
        %v733 = vadd.f32 %v725, %v732
        %734 = vst [vmem:[#allocation4] sm:$0x1] %v733
        %v735 = vmul.f32 %v469, %v701
        %v736 = vadd.f32 %v735, 0.0
        %v737 = vmul.f32 %v650, %v694
        %vm738 = vcmp.eq.s32.totalorder %v636, 1
        %v739 = vsel %vm738, 1, 0
        %v740 = vcvt.s32.f32 %v739
        %v741 = vmul.f32 %v737, %v737
        %v742 = vld [vmem:[#allocation2 + $0x1] sm:$0x1]
        %v743 = vmul.f32 %v737, %v740
        %v744 = vsel %vm705, %v743, 0.0
        %v745 = vrot.slane %v744, 4
        %v746 = vadd.f32 %v744, %v745
        %v747 = vrot.slane %v746, 2
        %v748 = vadd.f32 %v746, %v747
        %v749 = vrot.slane %v748, 1
        %v750 = vadd.f32 %v748, %v749
        %v751 = vadd.f32 %v742, %v750
        %752 = vst [vmem:[#allocation2 + $0x1] sm:$0x1] %v751
        %v753 = vld [vmem:[#allocation3 + $0x1] sm:$0x1]
        %v754 = vsel %vm705, %v741, 0.0
        %v755 = vrot.slane %v754, 4
        %v756 = vadd.f32 %v754, %v755
        %v757 = vrot.slane %v756, 2
        %v758 = vadd.f32 %v756, %v757
        %v759 = vrot.slane %v758, 1
        %v760 = vadd.f32 %v758, %v759
        %v761 = vadd.f32 %v753, %v760
        %762 = vst [vmem:[#allocation3 + $0x1] sm:$0x1] %v761
        %v763 = vld [vmem:[#allocation4 + $0x1] sm:$0x1]
        %v764 = vsel %vm705, %v740, 0.0
        %v765 = vrot.slane %v764, 4
        %v766 = vadd.f32 %v764, %v765
        %v767 = vrot.slane %v766, 2
        %v768 = vadd.f32 %v766, %v767
        %v769 = vrot.slane %v768, 1
        %v770 = vadd.f32 %v768, %v769
        %v771 = vadd.f32 %v763, %v770
        %772 = vst [vmem:[#allocation4 + $0x1] sm:$0x1] %v771
        %v773 = vmul.f32 %v488, %v740
        %v774 = vadd.f32 %v736, %v773
        %v775 = vmul.f32 %v653, %v694
        %vm776 = vcmp.eq.s32.totalorder %v636, 2
        %v777 = vsel %vm776, 1, 0
        %v778 = vcvt.s32.f32 %v777
        %v779 = vmul.f32 %v775, %v775
        %v780 = vld [vmem:[#allocation2 + $0x2] sm:$0x1]
        %v781 = vmul.f32 %v775, %v778
        %v782 = vsel %vm705, %v781, 0.0
        %v783 = vrot.slane %v782, 4
        %v784 = vadd.f32 %v782, %v783
        %v785 = vrot.slane %v784, 2
        %v786 = vadd.f32 %v784, %v785
        %v787 = vrot.slane %v786, 1
        %v788 = vadd.f32 %v786, %v787
        %v789 = vadd.f32 %v780, %v788
        %790 = vst [vmem:[#allocation2 + $0x2] sm:$0x1] %v789
        %v791 = vld [vmem:[#allocation3 + $0x2] sm:$0x1]
        %v792 = vsel %vm705, %v779, 0.0
        %v793 = vrot.slane %v792, 4
        %v794 = vadd.f32 %v792, %v793
        %v795 = vrot.slane %v794, 2
        %v796 = vadd.f32 %v794, %v795
        %v797 = vrot.slane %v796, 1
        %v798 = vadd.f32 %v796, %v797
        %v799 = vadd.f32 %v791, %v798
        %800 = vst [vmem:[#allocation3 + $0x2] sm:$0x1] %v799
        %v801 = vld [vmem:[#allocation4 + $0x2] sm:$0x1]
        %v802 = vsel %vm705, %v778, 0.0
        %v803 = vrot.slane %v802, 4
        %v804 = vadd.f32 %v802, %v803
        %v805 = vrot.slane %v804, 2
        %v806 = vadd.f32 %v804, %v805
        %v807 = vrot.slane %v806, 1
        %v808 = vadd.f32 %v806, %v807
        %v809 = vadd.f32 %v801, %v808
        %810 = vst [vmem:[#allocation4 + $0x2] sm:$0x1] %v809
        %v811 = vmul.f32 %v508, %v778
        %v812 = vadd.f32 %v774, %v811
        %v813 = vmul.f32 %v656, %v694
        %vm814 = vcmp.eq.s32.totalorder %v636, 3
        %v815 = vsel %vm814, 1, 0
        %v816 = vcvt.s32.f32 %v815
        %v817 = vmul.f32 %v813, %v813
        %v818 = vld [vmem:[#allocation2 + $0x3] sm:$0x1]
        %v819 = vmul.f32 %v813, %v816
        %v820 = vsel %vm705, %v819, 0.0
        %v821 = vrot.slane %v820, 4
        %v822 = vadd.f32 %v820, %v821
        %v823 = vrot.slane %v822, 2
        %v824 = vadd.f32 %v822, %v823
        %v825 = vrot.slane %v824, 1
        %v826 = vadd.f32 %v824, %v825
        %v827 = vadd.f32 %v818, %v826
        %828 = vst [vmem:[#allocation2 + $0x3] sm:$0x1] %v827
        %v829 = vld [vmem:[#allocation3 + $0x3] sm:$0x1]
        %v830 = vsel %vm705, %v817, 0.0
        %v831 = vrot.slane %v830, 4
        %v832 = vadd.f32 %v830, %v831
        %v833 = vrot.slane %v832, 2
        %v834 = vadd.f32 %v832, %v833
        %v835 = vrot.slane %v834, 1
        %v836 = vadd.f32 %v834, %v835
        %v837 = vadd.f32 %v829, %v836
        %838 = vst [vmem:[#allocation3 + $0x3] sm:$0x1] %v837
        %v839 = vld [vmem:[#allocation4 + $0x3] sm:$0x1]
        %v840 = vsel %vm705, %v816, 0.0
        %v841 = vrot.slane %v840, 4
        %v842 = vadd.f32 %v840, %v841
        %v843 = vrot.slane %v842, 2
        %v844 = vadd.f32 %v842, %v843
        %v845 = vrot.slane %v844, 1
        %v846 = vadd.f32 %v844, %v845
        %v847 = vadd.f32 %v839, %v846
        %848 = vst [vmem:[#allocation4 + $0x3] sm:$0x1] %v847
        %v849 = vmul.f32 %v528, %v816
        %v850 = vadd.f32 %v812, %v849
        %v851 = vmul.f32 %v659, %v694
        %vm852 = vcmp.eq.s32.totalorder %v636, 4
        %v853 = vsel %vm852, 1, 0
        %v854 = vcvt.s32.f32 %v853
        %v855 = vmul.f32 %v851, %v851
        %v856 = vld [vmem:[#allocation2 + $0x4] sm:$0x1]
        %v857 = vmul.f32 %v851, %v854
        %v858 = vsel %vm705, %v857, 0.0
        %v859 = vrot.slane %v858, 4
        %v860 = vadd.f32 %v858, %v859
        %v861 = vrot.slane %v860, 2
        %v862 = vadd.f32 %v860, %v861
        %v863 = vrot.slane %v862, 1
        %v864 = vadd.f32 %v862, %v863
        %v865 = vadd.f32 %v856, %v864
        %866 = vst [vmem:[#allocation2 + $0x4] sm:$0x1] %v865
        %v867 = vld [vmem:[#allocation3 + $0x4] sm:$0x1]
        %v868 = vsel %vm705, %v855, 0.0
        %v869 = vrot.slane %v868, 4
        %v870 = vadd.f32 %v868, %v869
        %v871 = vrot.slane %v870, 2
        %v872 = vadd.f32 %v870, %v871
        %v873 = vrot.slane %v872, 1
        %v874 = vadd.f32 %v872, %v873
        %v875 = vadd.f32 %v867, %v874
        %876 = vst [vmem:[#allocation3 + $0x4] sm:$0x1] %v875
        %v877 = vld [vmem:[#allocation4 + $0x4] sm:$0x1]
        %v878 = vsel %vm705, %v854, 0.0
        %v879 = vrot.slane %v878, 4
        %v880 = vadd.f32 %v878, %v879
        %v881 = vrot.slane %v880, 2
        %v882 = vadd.f32 %v880, %v881
        %v883 = vrot.slane %v882, 1
        %v884 = vadd.f32 %v882, %v883
        %v885 = vadd.f32 %v877, %v884
        %886 = vst [vmem:[#allocation4 + $0x4] sm:$0x1] %v885
        %v887 = vmul.f32 %v548, %v854
        %v888 = vadd.f32 %v850, %v887
        %v889 = vmul.f32 %v662, %v694
        %vm890 = vcmp.eq.s32.totalorder %v636, 5
        %v891 = vsel %vm890, 1, 0
        %v892 = vcvt.s32.f32 %v891
        %v893 = vmul.f32 %v889, %v889
        %v894 = vld [vmem:[#allocation2 + $0x5] sm:$0x1]
        %v895 = vmul.f32 %v889, %v892
        %v896 = vsel %vm705, %v895, 0.0
        %v897 = vrot.slane %v896, 4
        %v898 = vadd.f32 %v896, %v897
        %v899 = vrot.slane %v898, 2
        %v900 = vadd.f32 %v898, %v899
        %v901 = vrot.slane %v900, 1
        %v902 = vadd.f32 %v900, %v901
        %v903 = vadd.f32 %v894, %v902
        %904 = vst [vmem:[#allocation2 + $0x5] sm:$0x1] %v903
        %v905 = vld [vmem:[#allocation3 + $0x5] sm:$0x1]
        %v906 = vsel %vm705, %v893, 0.0
        %v907 = vrot.slane %v906, 4
        %v908 = vadd.f32 %v906, %v907
        %v909 = vrot.slane %v908, 2
        %v910 = vadd.f32 %v908, %v909
        %v911 = vrot.slane %v910, 1
        %v912 = vadd.f32 %v910, %v911
        %v913 = vadd.f32 %v905, %v912
        %914 = vst [vmem:[#allocation3 + $0x5] sm:$0x1] %v913
        %v915 = vld [vmem:[#allocation4 + $0x5] sm:$0x1]
        %v916 = vsel %vm705, %v892, 0.0
        %v917 = vrot.slane %v916, 4
        %v918 = vadd.f32 %v916, %v917
        %v919 = vrot.slane %v918, 2
        %v920 = vadd.f32 %v918, %v919
        %v921 = vrot.slane %v920, 1
        %v922 = vadd.f32 %v920, %v921
        %v923 = vadd.f32 %v915, %v922
        %924 = vst [vmem:[#allocation4 + $0x5] sm:$0x1] %v923
        %v925 = vmul.f32 %v569, %v892
        %v926 = vadd.f32 %v888, %v925
        %v927 = vmul.f32 %v665, %v694
        %vm928 = vcmp.eq.s32.totalorder %v636, 6
        %v929 = vsel %vm928, 1, 0
        %v930 = vcvt.s32.f32 %v929
        %v931 = vmul.f32 %v927, %v927
        %v932 = vld [vmem:[#allocation2 + $0x6] sm:$0x1]
        %v933 = vmul.f32 %v927, %v930
        %v934 = vsel %vm705, %v933, 0.0
        %v935 = vrot.slane %v934, 4
        %v936 = vadd.f32 %v934, %v935
        %v937 = vrot.slane %v936, 2
        %v938 = vadd.f32 %v936, %v937
        %v939 = vrot.slane %v938, 1
        %v940 = vadd.f32 %v938, %v939
        %v941 = vadd.f32 %v932, %v940
        %942 = vst [vmem:[#allocation2 + $0x6] sm:$0x1] %v941
        %v943 = vld [vmem:[#allocation3 + $0x6] sm:$0x1]
        %v944 = vsel %vm705, %v931, 0.0
        %v945 = vrot.slane %v944, 4
        %v946 = vadd.f32 %v944, %v945
        %v947 = vrot.slane %v946, 2
        %v948 = vadd.f32 %v946, %v947
        %v949 = vrot.slane %v948, 1
        %v950 = vadd.f32 %v948, %v949
        %v951 = vadd.f32 %v943, %v950
        %952 = vst [vmem:[#allocation3 + $0x6] sm:$0x1] %v951
        %v953 = vld [vmem:[#allocation4 + $0x6] sm:$0x1]
        %v954 = vsel %vm705, %v930, 0.0
        %v955 = vrot.slane %v954, 4
        %v956 = vadd.f32 %v954, %v955
        %v957 = vrot.slane %v956, 2
        %v958 = vadd.f32 %v956, %v957
        %v959 = vrot.slane %v958, 1
        %v960 = vadd.f32 %v958, %v959
        %v961 = vadd.f32 %v953, %v960
        %962 = vst [vmem:[#allocation4 + $0x6] sm:$0x1] %v961
        %v963 = vmul.f32 %v590, %v930
        %v964 = vadd.f32 %v926, %v963
        %v965 = vmul.f32 %v668, %v694
        %vm966 = vcmp.eq.s32.totalorder %v636, 7
        %v967 = vsel %vm966, 1, 0
        %v968 = vcvt.s32.f32 %v967
        %v969 = vmul.f32 %v965, %v965
        %v970 = vld [vmem:[#allocation2 + $0x7] sm:$0x1]
        %v971 = vmul.f32 %v965, %v968
        %v972 = vsel %vm705, %v971, 0.0
        %v973 = vrot.slane %v972, 4
        %v974 = vadd.f32 %v972, %v973
        %v975 = vrot.slane %v974, 2
        %v976 = vadd.f32 %v974, %v975
        %v977 = vrot.slane %v976, 1
        %v978 = vadd.f32 %v976, %v977
        %v979 = vadd.f32 %v970, %v978
        %980 = vst [vmem:[#allocation2 + $0x7] sm:$0x1] %v979
        %v981 = vld [vmem:[#allocation3 + $0x7] sm:$0x1]
        %v982 = vsel %vm705, %v969, 0.0
        %v983 = vrot.slane %v982, 4
        %v984 = vadd.f32 %v982, %v983
        %v985 = vrot.slane %v984, 2
        %v986 = vadd.f32 %v984, %v985
        %v987 = vrot.slane %v986, 1
        %v988 = vadd.f32 %v986, %v987
        %v989 = vadd.f32 %v981, %v988
        %990 = vst [vmem:[#allocation3 + $0x7] sm:$0x1] %v989
        %v991 = vld [vmem:[#allocation4 + $0x7] sm:$0x1]
        %v992 = vsel %vm705, %v968, 0.0
        %v993 = vrot.slane %v992, 4
        %v994 = vadd.f32 %v992, %v993
        %v995 = vrot.slane %v994, 2
        %v996 = vadd.f32 %v994, %v995
        %v997 = vrot.slane %v996, 1
        %v998 = vadd.f32 %v996, %v997
        %v999 = vadd.f32 %v991, %v998
        %1000 = vst [vmem:[#allocation4 + $0x7] sm:$0x1] %v999
        %v1001 = vmul.f32 %v611, %v968
        %v1002 = vadd.f32 %v964, %v1001
        %v1003 = vmul.f32 %v671, %v694
        %vm1004 = vcmp.eq.s32.totalorder %v636, 8
        %v1005 = vsel %vm1004, 1, 0
        %v1006 = vcvt.s32.f32 %v1005
        %v1007 = vmul.f32 %v1003, %v1003
        %v1008 = vld [vmem:[#allocation2 + $0x8] sm:$0x1]
        %v1009 = vmul.f32 %v1003, %v1006
        %v1010 = vsel %vm705, %v1009, 0.0
        %v1011 = vrot.slane %v1010, 4
        %v1012 = vadd.f32 %v1010, %v1011
        %v1013 = vrot.slane %v1012, 2
        %v1014 = vadd.f32 %v1012, %v1013
        %v1015 = vrot.slane %v1014, 1
        %v1016 = vadd.f32 %v1014, %v1015
        %v1017 = vadd.f32 %v1008, %v1016
        %1018 = vst [vmem:[#allocation2 + $0x8] sm:$0x1] %v1017
        %v1019 = vld [vmem:[#allocation3 + $0x8] sm:$0x1]
        %v1020 = vsel %vm705, %v1007, 0.0
        %v1021 = vrot.slane %v1020, 4
        %v1022 = vadd.f32 %v1020, %v1021
        %v1023 = vrot.slane %v1022, 2
        %v1024 = vadd.f32 %v1022, %v1023
        %v1025 = vrot.slane %v1024, 1
        %v1026 = vadd.f32 %v1024, %v1025
        %v1027 = vadd.f32 %v1019, %v1026
        %1028 = vst [vmem:[#allocation3 + $0x8] sm:$0x1] %v1027
        %v1029 = vld [vmem:[#allocation4 + $0x8] sm:$0x1]
        %v1030 = vsel %vm705, %v1006, 0.0
        %v1031 = vrot.slane %v1030, 4
        %v1032 = vadd.f32 %v1030, %v1031
        %v1033 = vrot.slane %v1032, 2
        %v1034 = vadd.f32 %v1032, %v1033
        %v1035 = vrot.slane %v1034, 1
        %v1036 = vadd.f32 %v1034, %v1035
        %v1037 = vadd.f32 %v1029, %v1036
        %1038 = vst [vmem:[#allocation4 + $0x8] sm:$0x1] %v1037
        %v1039 = vmul.f32 %v632, %v1006
        %v1040 = vadd.f32 %v1002, %v1039
        %v1041 = vsub.f32 %v697, %v1040
        %v1042 = vld [vmem:[#allocation5] sm:$0x1]
        %v1043 = vsel %vm705, %v1041, 0.0
        %v1044 = vrot.slane %v1043, 4
        %v1045 = vadd.f32 %v1043, %v1044
        %v1046 = vrot.slane %v1045, 2
        %v1047 = vadd.f32 %v1045, %v1046
        %v1048 = vrot.slane %v1047, 1
        %v1049 = vadd.f32 %v1047, %v1048
        %v1050 = vadd.f32 %v1042, %v1049
        %1051 = vst [vmem:[#allocation5] sm:$0x1] %v1050
        // Predicated region
        $region49: #{tpu_custom_call.1} parent=35 // pred_check
          %p1052 = pneg %p431
        $region50: #{tpu_custom_call.1} parent=35 // pred_check_branch
          %1054 = sbr.rel (%p1052) target = $region52
        $region51: #{tpu_custom_call.1} parent=35 // pred_region
          %v1055 = vld [vmem:[#allocation2] sm:$0xff]
          %v1056 = vld [vmem:[#allocation2 + $0x8] sm:$0x1]
          %1057 = vadd.xlane.f32.xlu0 %v1055
          %v1058 = vpop.xlane.xlu0 %1057
          %vm1059 = vcmask 1040384
          %v1060 = vsel %vm1059, %v1056, 0.0
          %1061 = vadd.xlane.f32.xlu0 %v1060
          %v1062 = vpop.xlane.xlu0 %1061
          %vm1063 = vcmask 7168
          %1064 = vst.msk [vmem:[%s417] sm:$0xff] %vm1063, %v1058
          %vm1065 = vcmask 0
          %1066 = vst.msk [vmem:[%s417 + $0x8] sm:$0x1] %vm1065, %v1062
          %v1067 = vld [vmem:[#allocation3] sm:$0xff]
          %v1068 = vld [vmem:[#allocation3 + $0x8] sm:$0x1]
          %1069 = vadd.xlane.f32.xlu0 %v1067
          %v1070 = vpop.xlane.xlu0 %1069
          %v1071 = vsel %vm1059, %v1068, 0.0
          %1072 = vadd.xlane.f32.xlu0 %v1071
          %v1073 = vpop.xlane.xlu0 %1072
          %1074 = vst.msk [vmem:[%s422] sm:$0xff] %vm1063, %v1070
          %1075 = vst.msk [vmem:[%s422 + $0x8] sm:$0x1] %vm1065, %v1073
          %v1076 = vld [vmem:[#allocation4] sm:$0xff]
          %v1077 = vld [vmem:[#allocation4 + $0x8] sm:$0x1]
          %1078 = vadd.xlane.f32.xlu0 %v1076
          %v1079 = vpop.xlane.xlu0 %1078
          %v1080 = vsel %vm1059, %v1077, 0.0
          %1081 = vadd.xlane.f32.xlu0 %v1080
          %v1082 = vpop.xlane.xlu0 %1081
          %1083 = vst.msk [vmem:[%s427] sm:$0xff] %vm1063, %v1079
          %1084 = vst.msk [vmem:[%s427 + $0x8] sm:$0x1] %vm1065, %v1082
          %v1085 = vld [vmem:[#allocation5] sm:$0x1]
          %v1086 = vsel %vm1059, %v1085, 0.0
          %1087 = vadd.xlane.f32.xlu0 %v1086
          %v1088 = vpop.xlane.xlu0 %1087
          %1089 = vst.msk [vmem:[%s430] sm:$0x1] %vm1065, %v1088
        $region52: #{tpu_custom_call.1} parent=35 // pred_fallthru
          _
        %s1090 = sand.u32 %s145, 1
        %s1091 = scalar_lea.sflag [#allocation7], %s1090
        %s1092 = sand.u32 %s145, 1
        %s1093 = smul.addr %s1092, 18
        %s1094 = scalar_lea.vmem [#allocation11], %s1093
        %p1095 = scmp.lt.s32.totalorder %s29, 1
        %s1096 = scalar_select %p1095, %s29, 1
        %s1097 = smul.addr %s1096, 2
        %s1098 = smul.addr %s1097, 8
        %s1099 = scalar_lea.vmem %s5, %s1098
        %p1100 = scmp.lt.s32.totalorder %s29, 1
        %s1101 = scalar_select %p1100, %s29, 1
        %s1102 = smul.addr %s1101, 2
        %s1103 = smul.addr %s1102, 8
        %s1104 = scalar_lea.vmem %s6, %s1103
        %p1105 = scmp.lt.s32.totalorder %s29, 1
        %s1106 = scalar_select %p1105, %s29, 1
        %s1107 = smul.addr %s1106, 2
        %s1108 = smul.addr %s1107, 8
        %s1109 = scalar_lea.vmem %s7, %s1108
        %p1110 = scmp.lt.s32.totalorder %s29, 1
        %s1111 = scalar_select %p1110, %s29, 1
        %s1112 = scalar_lea.vmem %s8, %s1111
        // Predicated region
        $region53: #{tpu_custom_call.1} parent=35 // pred_check
          %p1113 = pneg %p155
        $region54: #{tpu_custom_call.1} parent=35 // pred_check_branch
          %1115 = sbr.rel (%p1113) target = $region56
        $region55: #{tpu_custom_call.1} parent=35 // pred_region
          %1117 = vsyncadd %s1091, 0
          %s1118 = smul.addr %s29, 9
          %s1119 = sadd.s32 %s30, %s1118
          %s1120 = smul.addr %s1119, 2
          %s1121 = scalar_lea.hbm %s4, %s1120
          %s1122 = sshll.u32 %s1094, 4
          %s1123 = int_to_ptr.vmem [resolvable:$true] %s1122
          %s1124 = sshll.u32 %s1121, 4
          %s1125 = int_to_ptr.hbm [resolvable:$true] %s1124
          %1130 = dma.vmem_to_hbm [thread:$0]  %s1123, 288, %s1125, %s1091, 32, 32, 2
        $region56: #{tpu_custom_call.1} parent=35 // pred_fallthru
          _
        // Predicated region
        $region57: #{tpu_custom_call.1} parent=35 // pred_check
          %p1131 = pneg %p181
        $region58: #{tpu_custom_call.1} parent=35 // pred_check_branch
          %1133 = sbr.rel (%p1131) target = $region60
        $region59: #{tpu_custom_call.1} parent=35 // pred_region
          _
        $region60: #{tpu_custom_call.1} parent=35 // pred_fallthru
          _
        // Predicated region
        $region61: #{tpu_custom_call.1} parent=35 // pred_check
          %p1134 = pneg %p207
        $region62: #{tpu_custom_call.1} parent=35 // pred_check_branch
          %1136 = sbr.rel (%p1134) target = $region64
        $region63: #{tpu_custom_call.1} parent=35 // pred_region
          _
        $region64: #{tpu_custom_call.1} parent=35 // pred_fallthru
          _
        // Predicated region
        $region65: #{tpu_custom_call.1} parent=35 // pred_check
          %p1137 = pneg %p233
        $region66: #{tpu_custom_call.1} parent=35 // pred_check_branch
          %1139 = sbr.rel (%p1137) target = $region68
        $region67: #{tpu_custom_call.1} parent=35 // pred_region
          _
        $region68: #{tpu_custom_call.1} parent=35 // pred_fallthru
          _
        // Predicated region
        $region69: #{tpu_custom_call.1} parent=35 // pred_check
          %p1140 = pneg %p259
        $region70: #{tpu_custom_call.1} parent=35 // pred_check_branch
          %1142 = sbr.rel (%p1140) target = $region72
        $region71: #{tpu_custom_call.1} parent=35 // pred_region
          _
        $region72: #{tpu_custom_call.1} parent=35 // pred_fallthru
          _
      $region36: #{tpu_custom_call.1} parent=5 // pred_fallthru
        _
      %p1143 = scmp.le.s32.totalorder 2, %s20
      // Predicated region
      $region73: #{tpu_custom_call.1} parent=5 // pred_check
        %p1144 = pneg %p1143
      $region74: #{tpu_custom_call.1} parent=5 // pred_check_branch
        %1146 = sbr.rel (%p1144) target = $region76
      $region75: #{tpu_custom_call.1} parent=5 // pred_region
        %s1147 = ssub.s32 %s20, 2
        // Predicated region
        $region77: #{tpu_custom_call.1} parent=75 // pred_check
          %p1148 = pneg %p161
        $region78: #{tpu_custom_call.1} parent=75 // pred_check_branch
          %1150 = sbr.rel (%p1148) target = $region80
        $region79: #{tpu_custom_call.1} parent=75 // pred_region
          %s1151 = sand.u32 %s146, 1
          %s1152 = scalar_lea.sflag [#allocation7], %s1151
          %s1153 = sand.u32 %s146, 1
          %s1154 = smul.addr %s1153, 18
          %s1155 = scalar_lea.vmem [#allocation11], %s1154
          %1157 = dma.done %s1152, 288
        $region80: #{tpu_custom_call.1} parent=75 // pred_fallthru
          _
        // Predicated region
        $region81: #{tpu_custom_call.1} parent=75 // pred_check
          %p1158 = pneg %p187
        $region82: #{tpu_custom_call.1} parent=75 // pred_check_branch
          %1160 = sbr.rel (%p1158) target = $region84
        $region83: #{tpu_custom_call.1} parent=75 // pred_region
          %p1161 = scmp.lt.s32.totalorder %s31, 1
          %s1162 = scalar_select %p1161, %s31, 1
          %s1163 = smul.addr %s1162, 2
          %s1164 = smul.addr %s1163, 8
          %s1165 = scalar_lea.vmem %s5, %s1164
        $region84: #{tpu_custom_call.1} parent=75 // pred_fallthru
          _
        // Predicated region
        $region85: #{tpu_custom_call.1} parent=75 // pred_check
          %p1166 = pneg %p213
        $region86: #{tpu_custom_call.1} parent=75 // pred_check_branch
          %1168 = sbr.rel (%p1166) target = $region88
        $region87: #{tpu_custom_call.1} parent=75 // pred_region
          %p1169 = scmp.lt.s32.totalorder %s31, 1
          %s1170 = scalar_select %p1169, %s31, 1
          %s1171 = smul.addr %s1170, 2
          %s1172 = smul.addr %s1171, 8
          %s1173 = scalar_lea.vmem %s6, %s1172
        $region88: #{tpu_custom_call.1} parent=75 // pred_fallthru
          _
        // Predicated region
        $region89: #{tpu_custom_call.1} parent=75 // pred_check
          %p1174 = pneg %p239
        $region90: #{tpu_custom_call.1} parent=75 // pred_check_branch
          %1176 = sbr.rel (%p1174) target = $region92
        $region91: #{tpu_custom_call.1} parent=75 // pred_region
          %p1177 = scmp.lt.s32.totalorder %s31, 1
          %s1178 = scalar_select %p1177, %s31, 1
          %s1179 = smul.addr %s1178, 2
          %s1180 = smul.addr %s1179, 8
          %s1181 = scalar_lea.vmem %s7, %s1180
        $region92: #{tpu_custom_call.1} parent=75 // pred_fallthru
          _
        // Predicated region
        $region93: #{tpu_custom_call.1} parent=75 // pred_check
          %p1182 = pneg %p265
        $region94: #{tpu_custom_call.1} parent=75 // pred_check_branch
          %1184 = sbr.rel (%p1182) target = $region96
        $region95: #{tpu_custom_call.1} parent=75 // pred_region
          %p1185 = scmp.lt.s32.totalorder %s31, 1
          %s1186 = scalar_select %p1185, %s31, 1
          %s1187 = scalar_lea.vmem %s8, %s1186
        $region96: #{tpu_custom_call.1} parent=75 // pred_fallthru
          _
      $region76: #{tpu_custom_call.1} parent=5 // pred_fallthru
        _
    $region6: #{tpu_custom_call.1} parent=1 // loop_footer
      %s24 = sadd.s32 1, %s20
    $region7: #{tpu_custom_call.1} parent=1 // loop_footer_branch
      %19 = sbr.rel target = $region3
    $region8: #{tpu_custom_call.1} parent=1 // loop_exit
      _
    %1188 = vsyncpa [#allocation7], 1
    %s1189 = scalar_lea.sflag [#allocation7], 1
    %1190 = vsyncpa %s1189, 1
    %1191 = vsyncpa [#allocation8], 1
    %s1192 = scalar_lea.sflag [#allocation8], 1
    %1193 = vsyncpa %s1192, 1
    %1194 = vsyncpa [#allocation10], 1

</llo_original>
